<compile_context>
chip_gen: v7x
topology: tpu7x:2x2x1
jax: 0.10.0
libtpu: 0.0.40
codegen_flags: <defaults>
</compile_context>

<pallas_src>
import jax
import jax.numpy as jnp
from jax import lax
from jax.experimental import pallas as pl
from jax.experimental.pallas import tpu as pltpu

BN_EPS = 1e-5
LRELU_SLOPE = 0.2

# stride-2 / kernel-3 sub-pixel tables: output o = 2*m + phase reads input
# m + delta (delta in {0,1}) through original kernel tap _KIDX[phase][delta];
# _VALID masks the nonexistent (phase=0, delta=1) tap.
_KIDX = ((1, 0), (2, 0))
_VALID = ((1.0, 0.0), (1.0, 1.0))


def _stats_kernel(p_ref, gram_ref, psum_ref):
    """Pass 1: accumulate the patch Gram matrix G = P P^T and the patch row-sum.

    The per-channel conv statistics are recovered in the wrapper as
    sum = W @ psum and sumsq = rowsum((W @ G) * W), avoiding the full
    (NC, K) @ (K, TM) matmul and the per-step full-lane reduction.
    """
    @pl.when(pl.program_id(1) == 0)
    def _():
        gram_ref[...] = jnp.zeros_like(gram_ref)
        psum_ref[...] = jnp.zeros_like(psum_ref)

    p = p_ref[...]                                             # (K, TM) bf16
    gram_ref[...] += lax.dot_general(                          # P @ P^T on the MXU
        p, p, (((1,), (1,)), ((), ())),
        preferred_element_type=jnp.float32)
    psum_ref[...] += jnp.sum(p.astype(jnp.float32), axis=1, keepdims=True)


def _apply_kernel(w_ref, p_ref, scale_ref, shift_ref, o_ref):
    """Pass 2: conv matmul, folded BN scale/shift + LeakyReLU, lane-dense bf16 store."""
    y = jnp.dot(w_ref[...], p_ref[...], preferred_element_type=jnp.float32)
    z = y * scale_ref[...] + shift_ref[...]
    o_ref[...] = jnp.where(z >= 0, z, LRELU_SLOPE * z).astype(o_ref.dtype)


def _phase_weight(weight):
    """(Cin, Cout, 3, 3, 3) -> (8*Cout, Cin*8) sub-pixel weight matrix.

    Row index = (pd, ph, pw, co) row-major; col index = (cin, dd, dh, dw).
    """
    Cin, Cout = weight.shape[0], weight.shape[1]
    rows = []
    for pd in range(2):
        for ph in range(2):
            for pw in range(2):
                taps = []
                for dd in range(2):
                    for dh in range(2):
                        for dw in range(2):
                            v = _VALID[pd][dd] * _VALID[ph][dh] * _VALID[pw][dw]
                            tap = weight[:, :, _KIDX[pd][dd], _KIDX[ph][dh],
                                         _KIDX[pw][dw]] * v          # (Cin, Cout)
                            taps.append(tap)
                blk = jnp.stack(taps, axis=0)                         # (8, Cin, Cout)
                rows.append(blk.transpose(2, 1, 0).reshape(Cout, Cin * 8))
    return jnp.concatenate(rows, axis=0)                              # (8*Cout, Cin*8)


def _pick_tile_m(K, NC, M):
    """Largest lane-dense (multiple-of-128) M tile whose double-buffered pass-2
    working set (bf16 patch tile in + bf16 output tile) stays under ~12 MiB,
    i.e. comfortably inside every generation's scoped-VMEM default
    (v5e 16 MiB, v6e/v7x 32 MiB)."""
    # TODO(synk): on v7x with very large channel counts, raise
    # pltpu.CompilerParams(vmem_limit_bytes=...) instead of shrinking the tile.
    budget = 12 * 1024 * 1024
    bytes_per_col = 2 * (K * 2 + NC * 2)          # double-buffered bf16 in + bf16 out
    tm = (budget - 4 * NC * K) // bytes_per_col
    tm = max(128, min(8192, (tm // 128) * 128))
    tm = min(tm, -(-M // 128) * 128)              # never larger than the padded problem
    return tm


def deconv3d_forward(x, weight, bias, gamma, beta, *,
                     kernel_size=3, stride=2, padding=1, output_padding=1):
    """x: (N, Cin, D, H, W) NCDHW; weight: (Cin, Cout, 3, 3, 3) (ConvTranspose3d)."""
    assert (kernel_size, stride, padding, output_padding) == (3, 2, 1, 1), \
        "sub-pixel lowering is specialized to the module's default 3/2/1/1 case"
    # TODO(synk): general (k, s, p, op) combinations need a different phase table.

    N, Cin, D, H, W = x.shape
    Cout = weight.shape[1]
    Do, Ho, Wo = 2 * D, 2 * H, 2 * W

    M = N * D * H * W
    K = Cin * 8
    NC = 8 * Cout

    # ---- glue: channel-major sub-pixel patch matrix P^T (K, M).
    # x is transposed to (Cin, N, D, H, W) FIRST so the stacked layout is already
    # (cin, tap, n, d, h, w) and the final (K, M) view is a free reshape
    # (no full-size HBM transpose of the 8x patch matrix).
    xt = jnp.transpose(x.astype(jnp.bfloat16), (1, 0, 2, 3, 4))       # (Cin, N, D, H, W)
    xp = jnp.pad(xt, ((0, 0), (0, 0), (0, 1), (0, 1), (0, 1)))        # high-side pad 1
    shifts = [xp[:, :, dd:dd + D, dh:dh + H, dw:dw + W]
              for dd in range(2) for dh in range(2) for dw in range(2)]
    pt = jnp.stack(shifts, axis=1).reshape(K, M)                      # (K, M) bf16
    # TODO(synk): building the 8 shifted views inside the kernels from a single
    # padded-x block would remove the remaining pt materialization (1 write + 2 reads).

    wT = _phase_weight(weight).astype(jnp.bfloat16)                   # (NC, K)

    # ---- M tiling: lane-dense tiles, VMEM-aware size
    TM = _pick_tile_m(K, NC, M)
    Mp1 = -(-M // (2 * TM)) * (2 * TM)   # pass 1: even tile count for the 2-way TC split
    Mp2 = -(-M // TM) * TM               # pass 2
    if Mp1 != M:
        pt = jnp.pad(pt, ((0, 0), (0, Mp1 - M)))   # true zeros: contribute 0 to G / psum
    n_inner = (Mp1 // TM) // 2

    # ---- pass 1: Gram + patch-sum accumulation, 2 independent partials ("parallel"
    # axis -> one per TensorCore on v7x), M axis "arbitrary" (accumulator).
    gram_parts, psum_parts = pl.pallas_call(
        _stats_kernel,
        out_shape=(jax.ShapeDtypeStruct((2 * K, K), jnp.float32),
                   jax.ShapeDtypeStruct((2 * K, 1), jnp.float32)),
        grid=(2, n_inner),
        in_specs=[pl.BlockSpec((K, TM), lambda c, i: (0, c * n_inner + i))],
        out_specs=[pl.BlockSpec((K, K), lambda c, i: (c, 0)),
                   pl.BlockSpec((K, 1), lambda c, i: (c, 0))],
        compiler_params=pltpu.CompilerParams(
            dimension_semantics=("parallel", "arbitrary")),
    )(pt)

    # ---- recover per-channel sums, fold conv bias + training-mode BN into scale/shift
    G = gram_parts.reshape(2, K, K).sum(axis=0)                       # (K, K)
    psum = psum_parts.reshape(2, K).sum(axis=0)                       # (K,)
    wf = wT.astype(jnp.float32)                                       # bf16-rounded, consistent w/ pass 2
    rowsum = wf @ psum                                                # (NC,)  = sum_m (W P)[r, m]
    rowsumsq = jnp.sum((wf @ G) * wf, axis=1)                         # (NC,)  = sum_m (W P)[r, m]^2

    count = jnp.float32(N * Do * Ho * Wo)                             # true voxel count = 8*M
    sum_c = rowsum.reshape(8, Cout).sum(axis=0)                       # aggregate over phases
    sumsq_c = rowsumsq.reshape(8, Cout).sum(axis=0)
    mean_conv = sum_c / count
    # E[y^2]-E[y]^2 in f32; clamp guards tiny negatives from cancellation.
    # TODO(synk): switch to a shifted/Welford accumulation if channel means get
    # large relative to their std on real data.
    var = jnp.maximum(sumsq_c / count - mean_conv * mean_conv, 0.0)
    mean_y = mean_conv + bias.astype(jnp.float32)
    scale_c = gamma.astype(jnp.float32) * lax.rsqrt(var + BN_EPS)
    shift_c = (bias.astype(jnp.float32) - mean_y) * scale_c + beta.astype(jnp.float32)
    colscale = jnp.tile(scale_c, 8).reshape(NC, 1)                    # (phase, co) ordering
    colshift = jnp.tile(shift_c, 8).reshape(NC, 1)

    # ---- pass 2: apply scale/shift + LeakyReLU, channel-major lane-dense bf16 output
    out_cols = pl.pallas_call(
        _apply_kernel,
        out_shape=jax.ShapeDtypeStruct((NC, Mp2), jnp.bfloat16),
        grid=(Mp2 // TM,),
        in_specs=[
            pl.BlockSpec((NC, K), lambda i: (0, 0)),
            pl.BlockSpec((K, TM), lambda i: (0, i)),
            pl.BlockSpec((NC, 1), lambda i: (0, 0)),
            pl.BlockSpec((NC, 1), lambda i: (0, 0)),
        ],
        out_specs=pl.BlockSpec((NC, TM), lambda i: (0, i)),
        compiler_params=pltpu.CompilerParams(
            dimension_semantics=("parallel",)),    # independent tiles (2 TCs on v7x)
    )(wT, pt, colscale, colshift)

    # ---- pixel-shuffle back to NCDHW (done on bf16 data -> half the transpose traffic)
    # TODO(synk): fully folding this shuffle into pass 2 needs an in-kernel phase
    # interleave (lane<->sublane transpose) that lowers poorly at these channel
    # counts; the XLA transpose on bf16 is kept instead.
    out = out_cols[:, :M].reshape(2, 2, 2, Cout, N, D, H, W)
    out = out.transpose(4, 3, 5, 0, 6, 1, 7, 2).reshape(N, Cout, Do, Ho, Wo)
    return out.astype(jnp.float32)


def _reference(x, weight, bias, gamma, beta):
    """Pure-JAX f32 reference of the module's forward (true semantics)."""
    Cout = weight.shape[1]
    wref = weight[:, :, ::-1, ::-1, ::-1].transpose(1, 0, 2, 3, 4)    # (O, I, k, k, k)
    y = lax.conv_general_dilated(
        x.astype(jnp.float32), wref.astype(jnp.float32),
        window_strides=(1, 1, 1),
        padding=[(1, 2), (1, 2), (1, 2)],
        lhs_dilation=(2, 2, 2),
        dimension_numbers=("NCDHW", "OIDHW", "NCDHW"),
    ) + bias.reshape(1, Cout, 1, 1, 1)
    m = y.mean(axis=(0, 2, 3, 4), keepdims=True)
    v = ((y - m) ** 2).mean(axis=(0, 2, 3, 4), keepdims=True)
    yn = (y - m) / jnp.sqrt(v + BN_EPS)
    yn = yn * gamma.reshape(1, Cout, 1, 1, 1) + beta.reshape(1, Cout, 1, 1, 1)
    return jnp.where(yn >= 0, yn, LRELU_SLOPE * yn)


if __name__ == "__main__":
    # Small deterministic setup: in_channels=4, out_channels=8, spatial 8^3 -> 16^3.
    N, Cin, Cout, D = 2, 4, 8, 8
    key = jax.random.PRNGKey(0)
    kx, kw, kb = jax.random.split(key, 3)

    x = jax.random.normal(kx, (N, Cin, D, D, D), dtype=jnp.float32)
    weight = 0.1 * jax.random.normal(kw, (Cin, Cout, 3, 3, 3), dtype=jnp.float32)
    bias = 0.1 * jax.random.normal(kb, (Cout,), dtype=jnp.float32)
    gamma = jnp.ones((Cout,), dtype=jnp.float32)    # BatchNorm3d default init
    beta = jnp.zeros((Cout,), dtype=jnp.float32)

    fwd = jax.jit(deconv3d_forward)
    out = jax.block_until_ready(fwd(x, weight, bias, gamma, beta))
    assert out.shape == (N, Cout, 2 * D, 2 * D, 2 * D), out.shape

    ref = _reference(x, weight, bias, gamma, beta)
    # bf16 MXU operands + bf16 output storage vs the all-f32 reference: worst-case
    # per-element error stays ~1e-2 on the BN-normalized (unit-variance) output,
    # so 3e-2 remains a safe yet structure-sensitive tolerance.
    err = float(jnp.max(jnp.abs(out - ref)))
    assert jnp.allclose(out, ref, rtol=3e-2, atol=3e-2), err

    print("KERNEL_OK")
</pallas_src>

<mosaic_0001>
module attributes {stable_mosaic.version = 11 : i64} {
  func.func @_stats_kernel(%arg0: i32, %arg1: i32, %arg2: memref<32x1024xbf16, #tpu.memory_space<vmem>>, %arg3: memref<32x32xf32, #tpu.memory_space<vmem>>, %arg4: memref<32x1xf32, #tpu.memory_space<vmem>>) attributes {dimension_semantics = [#tpu.dimension_semantics<parallel>, #tpu.dimension_semantics<arbitrary>], iteration_bounds = array<i64: 2, 1>, scalar_prefetch = 0 : i64, scratch_operands = 0 : i64, tpu.core_type = #tpu.core_type<tc>, window_params = [{transform_indices = @transform_0, window_bounds = array<i64: 32, 1024>}, {transform_indices = @transform_1, window_bounds = array<i64: 32, 32>}, {transform_indices = @transform_2, window_bounds = array<i64: 32, 1>}]} {
    %c0_i32 = arith.constant 0 : i32
    %0 = arith.cmpi eq, %arg1, %c0_i32 : i32
    %1 = arith.extui %0 : i1 to i32
    %c0_i32_0 = arith.constant 0 : i32
    %2 = arith.cmpi ne, %1, %c0_i32_0 : i32
    scf.if %2 {
      %cst_11 = arith.constant 0.000000e+00 : f32
      %14 = vector.broadcast %cst_11 : f32 to vector<32x32xf32>
      %c0_12 = arith.constant 0 : index
      %c0_13 = arith.constant 0 : index
      %15 = vector.load %arg3[%c0_12, %c0_13] : memref<32x32xf32, #tpu.memory_space<vmem>>, vector<32x32xf32>
      tpu.vector_store %arg3[%c0_12, %c0_13], %14 {strides = array<i32>} : memref<32x32xf32, #tpu.memory_space<vmem>>, vector<32x32xf32>,
      %cst_14 = arith.constant 0.000000e+00 : f32
      %16 = vector.broadcast %cst_14 : f32 to vector<32x1xf32>
      %c0_15 = arith.constant 0 : index
      %c0_16 = arith.constant 0 : index
      %17 = vector.load %arg4[%c0_15, %c0_16] : memref<32x1xf32, #tpu.memory_space<vmem>>, vector<32x1xf32>
      tpu.vector_store %arg4[%c0_15, %c0_16], %16 {strides = array<i32>} : memref<32x1xf32, #tpu.memory_space<vmem>>, vector<32x1xf32>,
    } else {
    }
    %c0 = arith.constant 0 : index
    %c0_1 = arith.constant 0 : index
    %3 = vector.load %arg2[%c0, %c0_1] : memref<32x1024xbf16, #tpu.memory_space<vmem>>, vector<32x1024xbf16>
    %c0_2 = arith.constant 0 : index
    %c0_3 = arith.constant 0 : index
    %4 = vector.load %arg3[%c0_2, %c0_3] : memref<32x32xf32, #tpu.memory_space<vmem>>, vector<32x32xf32>
    %cst = arith.constant dense<0.000000e+00> : vector<32x32xf32>
    %5 = tpu.matmul %3, %3, %cst {dimension_numbers = #tpu.dot_dimension_numbers<[1], [1], [0], [0], [0, 0, 1, 0], [], []>} : vector<32x1024xbf16>, vector<32x1024xbf16>, vector<32x32xf32> -> vector<32x32xf32>
    %6 = arith.addf %4, %5 : vector<32x32xf32>
    %c0_4 = arith.constant 0 : index
    %c0_5 = arith.constant 0 : index
    %7 = vector.load %arg3[%c0_4, %c0_5] : memref<32x32xf32, #tpu.memory_space<vmem>>, vector<32x32xf32>
    tpu.vector_store %arg3[%c0_4, %c0_5], %6 {strides = array<i32>} : memref<32x32xf32, #tpu.memory_space<vmem>>, vector<32x32xf32>,
    %c0_6 = arith.constant 0 : index
    %c0_7 = arith.constant 0 : index
    %8 = vector.load %arg4[%c0_6, %c0_7] : memref<32x1xf32, #tpu.memory_space<vmem>>, vector<32x1xf32>
    %9 = arith.extf %3 : vector<32x1024xbf16> to vector<32x1024xf32>
    %cst_8 = arith.constant dense<0.000000e+00> : vector<32xf32>
    %10 = vector.multi_reduction <add>, %9, %cst_8 [1] : vector<32x1024xf32> to vector<32xf32>
    %11 = vector.shape_cast %10 : vector<32xf32> to vector<32x1xf32>
    %12 = arith.addf %8, %11 : vector<32x1xf32>
    %c0_9 = arith.constant 0 : index
    %c0_10 = arith.constant 0 : index
    %13 = vector.load %arg4[%c0_9, %c0_10] : memref<32x1xf32, #tpu.memory_space<vmem>>, vector<32x1xf32>
    tpu.vector_store %arg4[%c0_9, %c0_10], %12 {strides = array<i32>} : memref<32x1xf32, #tpu.memory_space<vmem>>, vector<32x1xf32>,
    return
  }
  func.func @transform_0(%arg0: i32, %arg1: i32) -> (i32, i32) {
    %c1_i32 = arith.constant 1 : i32
    %0 = arith.muli %arg0, %c1_i32 : i32
    %1 = arith.addi %0, %arg1 : i32
    %c0_i32 = arith.constant 0 : i32
    %c0_i32_0 = arith.constant 0 : i32
    return %c0_i32, %1 : i32, i32
  }
  func.func @transform_1(%arg0: i32, %arg1: i32) -> (i32, i32) {
    %c0_i32 = arith.constant 0 : i32
    %c0_i32_0 = arith.constant 0 : i32
    return %arg0, %c0_i32 : i32, i32
  }
  func.func @transform_2(%arg0: i32, %arg1: i32) -> (i32, i32) {
    %c0_i32 = arith.constant 0 : i32
    %c0_i32_0 = arith.constant 0 : i32
    return %arg0, %c0_i32 : i32, i32
  }
}

module attributes {stable_mosaic.version = 11 : i64} {
  func.func @_apply_kernel(%arg0: i32, %arg1: memref<64x32xbf16, #tpu.memory_space<vmem>>, %arg2: memref<32x1024xbf16, #tpu.memory_space<vmem>>, %arg3: memref<64x1xf32, #tpu.memory_space<vmem>>, %arg4: memref<64x1xf32, #tpu.memory_space<vmem>>, %arg5: memref<64x1024xbf16, #tpu.memory_space<vmem>>) attributes {dimension_semantics = [#tpu.dimension_semantics<parallel>], iteration_bounds = array<i64: 1>, scalar_prefetch = 0 : i64, scratch_operands = 0 : i64, tpu.core_type = #tpu.core_type<tc>, window_params = [{pipeline_mode = #tpu.pipeline_mode<synchronous>, transform_indices = @transform_0, window_bounds = array<i64: 64, 32>}, {transform_indices = @transform_1, window_bounds = array<i64: 32, 1024>}, {pipeline_mode = #tpu.pipeline_mode<synchronous>, transform_indices = @transform_2, window_bounds = array<i64: 64, 1>}, {pipeline_mode = #tpu.pipeline_mode<synchronous>, transform_indices = @transform_3, window_bounds = array<i64: 64, 1>}, {transform_indices = @transform_4, window_bounds = array<i64: 64, 1024>}]} {
    %c0 = arith.constant 0 : index
    %c0_0 = arith.constant 0 : index
    %0 = vector.load %arg1[%c0, %c0_0] : memref<64x32xbf16, #tpu.memory_space<vmem>>, vector<64x32xbf16>
    %c0_1 = arith.constant 0 : index
    %c0_2 = arith.constant 0 : index
    %1 = vector.load %arg2[%c0_1, %c0_2] : memref<32x1024xbf16, #tpu.memory_space<vmem>>, vector<32x1024xbf16>
    %cst = arith.constant dense<0.000000e+00> : vector<64x1024xf32>
    %2 = tpu.matmul %0, %1, %cst {dimension_numbers = #tpu.dot_dimension_numbers<[1], [0], [0], [1], [0, 0, 1, 1], [], []>} : vector<64x32xbf16>, vector<32x1024xbf16>, vector<64x1024xf32> -> vector<64x1024xf32>
    %c0_3 = arith.constant 0 : index
    %c0_4 = arith.constant 0 : index
    %3 = vector.load %arg3[%c0_3, %c0_4] : memref<64x1xf32, #tpu.memory_space<vmem>>, vector<64x1xf32>
    %4 = vector.broadcast %3 : vector<64x1xf32> to vector<64x1024xf32>
    %5 = arith.mulf %2, %4 : vector<64x1024xf32>
    %c0_5 = arith.constant 0 : index
    %c0_6 = arith.constant 0 : index
    %6 = vector.load %arg4[%c0_5, %c0_6] : memref<64x1xf32, #tpu.memory_space<vmem>>, vector<64x1xf32>
    %7 = vector.broadcast %6 : vector<64x1xf32> to vector<64x1024xf32>
    %8 = arith.addf %5, %7 : vector<64x1024xf32>
    %cst_7 = arith.constant 0.000000e+00 : f32
    %9 = vector.broadcast %cst_7 : f32 to vector<64x1024xf32>
    %10 = arith.cmpf oge, %8, %9 : vector<64x1024xf32>
    %cst_8 = arith.constant 2.000000e-01 : f32
    %11 = vector.broadcast %cst_8 : f32 to vector<64x1024xf32>
    %12 = arith.mulf %11, %8 : vector<64x1024xf32>
    %13 = arith.select %10, %8, %12 : vector<64x1024xi1>, vector<64x1024xf32>
    %14 = arith.truncf %13 : vector<64x1024xf32> to vector<64x1024xbf16>
    %c0_9 = arith.constant 0 : index
    %c0_10 = arith.constant 0 : index
    %15 = vector.load %arg5[%c0_9, %c0_10] : memref<64x1024xbf16, #tpu.memory_space<vmem>>, vector<64x1024xbf16>
    tpu.vector_store %arg5[%c0_9, %c0_10], %14 {strides = array<i32>} : memref<64x1024xbf16, #tpu.memory_space<vmem>>, vector<64x1024xbf16>,
    return
  }
  func.func @transform_0(%arg0: i32) -> (i32, i32) {
    %c0_i32 = arith.constant 0 : i32
    %c0_i32_0 = arith.constant 0 : i32
    %c0_i32_1 = arith.constant 0 : i32
    return %c0_i32, %c0_i32_0 : i32, i32
  }
  func.func @transform_1(%arg0: i32) -> (i32, i32) {
    %c0_i32 = arith.constant 0 : i32
    %c0_i32_0 = arith.constant 0 : i32
    return %c0_i32, %arg0 : i32, i32
  }
  func.func @transform_2(%arg0: i32) -> (i32, i32) {
    %c0_i32 = arith.constant 0 : i32
    %c0_i32_0 = arith.constant 0 : i32
    %c0_i32_1 = arith.constant 0 : i32
    return %c0_i32, %c0_i32_0 : i32, i32
  }
  func.func @transform_3(%arg0: i32) -> (i32, i32) {
    %c0_i32 = arith.constant 0 : i32
    %c0_i32_0 = arith.constant 0 : i32
    %c0_i32_1 = arith.constant 0 : i32
    return %c0_i32, %c0_i32_0 : i32, i32
  }
  func.func @transform_4(%arg0: i32) -> (i32, i32) {
    %c0_i32 = arith.constant 0 : i32
    %c0_i32_0 = arith.constant 0 : i32
    return %c0_i32, %arg0 : i32, i32
  }
}

</mosaic_0001>

<llo_original>
// kernel: tile.18
$region0: #{tile.18}
  #allocation0 [shape = 's32[1]{0}', space=sflag, size = 0x4, scoped, tag = 'scoped memory for tile.18']
  %s0 = inlined_call_operand.vmem [shape: f32[8], index: 0, kind: input, shape index: {}]
  %s1 = inlined_call_operand.vmem [shape: f32[8,8], index: 1, kind: output, shape index: {}]
  // Predicated region
  $region2: #{tile.18} parent=0 // pred_check
    _
  $region3: #{tile.18} parent=0 // pred_check_branch
    %3 = sbr.rel (0) target = $region5
  $region4: #{tile.18} parent=0 // pred_region
    _
  $region5: #{tile.18} parent=0 // pred_fallthru
    _
  %v4 = vld [vmem:[%s0] ss:$0 sm:$0xff]
  %5 = vst [vmem:[%s1] sm:$0xff] %v4

// kernel: tile.0
$region0: #{tile.0}
  %s0 = inlined_call_operand.vmem [shape: f32[8,8], index: 0, kind: input, shape index: {}]
  %s1 = inlined_call_operand.vmem [shape: f32[64,1], index: 1, kind: output, shape index: {}]
  %v2 = vld [vmem:[%s0] sm:$0xff]
  %vm3 = vcmask 7168
  %4 = vst.msk [vmem:[%s1] ss:$8 sm:$0xf] %vm3, %v2
  %5 = vst.msk [vmem:[%s1] ss:$8 sm:$0xf0] %vm3, %v2
  %v6 = vld [vmem:[%s0] sm:$0xff]
  %7 = vrot.lane.b32.xlu0 %v6, 127
  %v8 = vpop.permute.xlu0 %7
  %vm9 = vcmask 7168
  %s10 = scalar_lea.vmem %s1, 1
  %11 = vst.msk [vmem:[%s10] ss:$8 sm:$0xf] %vm9, %v8
  %s12 = scalar_lea.vmem %s1, 1
  %13 = vst.msk [vmem:[%s12] ss:$8 sm:$0xf0] %vm9, %v8
  %v14 = vld [vmem:[%s0] sm:$0xff]
  %15 = vrot.lane.b32.xlu0 %v14, 126
  %v16 = vpop.permute.xlu0 %15
  %vm17 = vcmask 7168
  %s18 = scalar_lea.vmem %s1, 2
  %19 = vst.msk [vmem:[%s18] ss:$8 sm:$0xf] %vm17, %v16
  %s20 = scalar_lea.vmem %s1, 2
  %21 = vst.msk [vmem:[%s20] ss:$8 sm:$0xf0] %vm17, %v16
  %v22 = vld [vmem:[%s0] sm:$0xff]
  %23 = vrot.lane.b32.xlu0 %v22, 125
  %v24 = vpop.permute.xlu0 %23
  %vm25 = vcmask 7168
  %s26 = scalar_lea.vmem %s1, 3
  %27 = vst.msk [vmem:[%s26] ss:$8 sm:$0xf] %vm25, %v24
  %s28 = scalar_lea.vmem %s1, 3
  %29 = vst.msk [vmem:[%s28] ss:$8 sm:$0xf0] %vm25, %v24
  %v30 = vld [vmem:[%s0] sm:$0xff]
  %31 = vrot.lane.b32.xlu0 %v30, 124
  %v32 = vpop.permute.xlu0 %31
  %vm33 = vcmask 7168
  %s34 = scalar_lea.vmem %s1, 4
  %35 = vst.msk [vmem:[%s34] ss:$8 sm:$0xf] %vm33, %v32
  %s36 = scalar_lea.vmem %s1, 4
  %37 = vst.msk [vmem:[%s36] ss:$8 sm:$0xf0] %vm33, %v32
  %v38 = vld [vmem:[%s0] sm:$0xff]
  %39 = vrot.lane.b32.xlu0 %v38, 123
  %v40 = vpop.permute.xlu0 %39
  %vm41 = vcmask 7168
  %s42 = scalar_lea.vmem %s1, 5
  %43 = vst.msk [vmem:[%s42] ss:$8 sm:$0xf] %vm41, %v40
  %s44 = scalar_lea.vmem %s1, 5
  %45 = vst.msk [vmem:[%s44] ss:$8 sm:$0xf0] %vm41, %v40
  %v46 = vld [vmem:[%s0] sm:$0xff]
  %47 = vrot.lane.b32.xlu0 %v46, 122
  %v48 = vpop.permute.xlu0 %47
  %vm49 = vcmask 7168
  %s50 = scalar_lea.vmem %s1, 6
  %51 = vst.msk [vmem:[%s50] ss:$8 sm:$0xf] %vm49, %v48
  %s52 = scalar_lea.vmem %s1, 6
  %53 = vst.msk [vmem:[%s52] ss:$8 sm:$0xf0] %vm49, %v48
  %v54 = vld [vmem:[%s0] sm:$0xff]
  %55 = vrot.lane.b32.xlu0 %v54, 121
  %v56 = vpop.permute.xlu0 %55
  %vm57 = vcmask 7168
  %s58 = scalar_lea.vmem %s1, 7
  %59 = vst.msk [vmem:[%s58] ss:$8 sm:$0xf] %vm57, %v56
  %s60 = scalar_lea.vmem %s1, 7
  %61 = vst.msk [vmem:[%s60] ss:$8 sm:$0xf0] %vm57, %v56

// kernel: deconv3d_forward.2
$region0: #{deconv3d_forward.2}
  #allocation0 [shape = 'u32[]', space=smem, size = 0x4, offset = 0x4, fixed_abs, tag = 'smem constant byte address 0x4 - core index']
  #allocation1 [shape = 'u32[144,128]{1,0:T(1,128)}', space=vmem, size = 0x12000, scoped, tag = 'internal scratch']
  %s0 = inlined_call_operand.vmem [shape: bf16[32,2048], index: 0, kind: input, shape index: {}]
  %s1 = inlined_call_operand.vmem [shape: f32[64,32], index: 1, kind: output, shape index: {0}]
  %s2 = inlined_call_operand.vmem [shape: f32[64,1], index: 2, kind: output, shape index: {1}]
  %3 = xla_tuple %s1, %s2
  %s4 = sld [smem:[#allocation0]]
  $region72: #{deconv3d_forward.2} parent=0
    _
  %s6 = ssub.s32 1, %s4
  %s7 = scalar_select 0, %s6, %s4
  $region1: #{deconv3d_forward.2} parent=0
    #allocation2 [shape = 'u8[131072]{0}', space=vmem, size = 0x20000, scoped, tag = 'input window, operand 0']
    loop: start=0, step=1, limit=4
    $region2: #{deconv3d_forward.2} parent=1 // loop_pre_header
      _
    $region3: #{deconv3d_forward.2} parent=1 // loop_header
      %s9 = sphi 0, %s13
      %p10 = scmp.ge.s32.totalorder %s9, 4
      %s16 = sphi 0, %s28
      %s17 = sphi 0, %s24
      %s18 = sphi 0, %s16
      %s19 = sphi 0, %s17
      %s20 = sphi 0, %s18
      %s21 = sphi 0, %s19
      %s33 = sphi 0, %s35
      %s36 = sphi 0, %s33
      %s37 = sphi 0, %s36
      %s53 = sphi 0, %s37
      %s59 = sphi 0, %s61
      %s62 = sphi 0, %s59
      %s63 = sphi 0, %s62
      %s79 = sphi 0, %s63
      %s85 = sphi 0, %s87
      %s88 = sphi 0, %s85
      %s89 = sphi 0, %s88
      %s105 = sphi 0, %s89
    $region4: #{deconv3d_forward.2} parent=1 // loop_header_branch
      %12 = sbr.rel (%p10) target = $region8
    $region5: #{deconv3d_forward.2} parent=1 // loop_body
      %s14 = ssub.s32 %s9, 1
      %s15 = ssub.s32 %s9, 2
      %s22 = sadd.s32 1, %s17
      %p23 = scmp.ge.s32.totalorder %s22, 1
      %s24 = scalar_select %p23, 0, %s22
      %s25 = sadd.s32 1, %s16
      %s26 = scalar_select %p23, %s25, %s16
      %p27 = scmp.ge.s32.totalorder %s26, 2
      %s28 = scalar_select %p27, 0, %s26
      %s29 = sadd.s32 %s16, %s17
      %s30 = sadd.s32 %s28, %s24
      %s31 = ssub.s32 %s29, %s30
      %p32 = scmp.eq.s32.totalorder %s31, 0
      %s34 = sadd.s32 %s33, 1
      %s35 = scalar_select %p32, %s33, %s34
      %p38 = pneg %p32
      %p39 = scmp.eq.s32.totalorder %s9, 1
      %p40 = por %p38, %p39
      %p41 = scmp.ne.s32.totalorder %s33, %s36
      %p42 = scmp.eq.s32.totalorder %s9, 0
      %p43 = por %p41, %p42
      %p44 = scmp.ne.s32.totalorder %s33, %s36
      %p45 = scmp.eq.s32.totalorder %s14, 1
      %p46 = por %p44, %p45
      %p47 = scmp.ne.s32.totalorder %s36, %s37
      %p48 = scmp.eq.s32.totalorder %s14, 0
      %p49 = por %p47, %p48
      %p50 = scmp.ne.s32.totalorder %s36, %s37
      %p51 = scmp.eq.s32.totalorder %s15, 1
      %p52 = por %p50, %p51
      %p54 = scmp.ne.s32.totalorder %s37, %s53
      %p55 = scmp.eq.s32.totalorder %s15, 0
      %p56 = por %p54, %p55
      %s57 = ssub.s32 %s16, %s28
      %p58 = scmp.eq.s32.totalorder %s57, 0
      %s60 = sadd.s32 %s59, 1
      %s61 = scalar_select %p58, %s59, %s60
      %p64 = pneg %p58
      %p65 = scmp.eq.s32.totalorder %s9, 1
      %p66 = por %p64, %p65
      %p67 = scmp.ne.s32.totalorder %s59, %s62
      %p68 = scmp.eq.s32.totalorder %s9, 0
      %p69 = por %p67, %p68
      %p70 = scmp.ne.s32.totalorder %s59, %s62
      %p71 = scmp.eq.s32.totalorder %s14, 1
      %p72 = por %p70, %p71
      %p73 = scmp.ne.s32.totalorder %s62, %s63
      %p74 = scmp.eq.s32.totalorder %s14, 0
      %p75 = por %p73, %p74
      %p76 = scmp.ne.s32.totalorder %s62, %s63
      %p77 = scmp.eq.s32.totalorder %s15, 1
      %p78 = por %p76, %p77
      %p80 = scmp.ne.s32.totalorder %s63, %s79
      %p81 = scmp.eq.s32.totalorder %s15, 0
      %p82 = por %p80, %p81
      %s83 = ssub.s32 %s16, %s28
      %p84 = scmp.eq.s32.totalorder %s83, 0
      %s86 = sadd.s32 %s85, 1
      %s87 = scalar_select %p84, %s85, %s86
      %p90 = pneg %p84
      %p91 = scmp.eq.s32.totalorder %s9, 1
      %p92 = por %p90, %p91
      %p93 = scmp.ne.s32.totalorder %s85, %s88
      %p94 = scmp.eq.s32.totalorder %s9, 0
      %p95 = por %p93, %p94
      %p96 = scmp.ne.s32.totalorder %s85, %s88
      %p97 = scmp.eq.s32.totalorder %s14, 1
      %p98 = por %p96, %p97
      %p99 = scmp.ne.s32.totalorder %s88, %s89
      %p100 = scmp.eq.s32.totalorder %s14, 0
      %p101 = por %p99, %p100
      %p102 = scmp.ne.s32.totalorder %s88, %s89
      %p103 = scmp.eq.s32.totalorder %s15, 1
      %p104 = por %p102, %p103
      %p106 = scmp.ne.s32.totalorder %s89, %s105
      %p107 = scmp.eq.s32.totalorder %s15, 0
      %p108 = por %p106, %p107
      %p109 = scmp.le.s32.totalorder 1, %s9
      %p110 = scmp.lt.s32.totalorder %s9, 3
      %p111 = pnand %p109, %p110
      %p112 = pneg %p111
      // Predicated region
      $region9: #{deconv3d_forward.2} parent=5 // pred_check
        _
      $region10: #{deconv3d_forward.2} parent=5 // pred_check_branch
        %114 = sbr.rel (%p111) target = $region12
      $region11: #{deconv3d_forward.2} parent=5 // pred_region
        %s115 = ssub.s32 %s9, 1
      $region12: #{deconv3d_forward.2} parent=5 // pred_fallthru
        _
      %p116 = scmp.lt.s32.totalorder %s9, 2
      // Predicated region
      $region13: #{deconv3d_forward.2} parent=5 // pred_check
        %p117 = pneg %p116
      $region14: #{deconv3d_forward.2} parent=5 // pred_check_branch
        %119 = sbr.rel (%p117) target = $region16
      $region15: #{deconv3d_forward.2} parent=5 // pred_region
        // Predicated region
        $region17: #{deconv3d_forward.2} parent=15 // pred_check
          %p120 = pneg %p43
        $region18: #{deconv3d_forward.2} parent=15 // pred_check_branch
          %122 = sbr.rel (%p120) target = $region20
        $region19: #{deconv3d_forward.2} parent=15 // pred_region
          %s123 = sand.u32 %s33, 1
          %s124 = sand.u32 %s33, 1
          %s125 = smul.addr %s124, 128
          %s126 = scalar_lea.vmem [#allocation2], %s125
          %s127 = sadd.s32 %s16, %s17
          %s128 = smul.u32 8, %s127
          %s129 = smul.addr %s128, 4
          %s130 = scalar_lea.vmem %s0, %s129
          // Predicated region
          $region21: #{deconv3d_forward.2} parent=19 // pred_check
            _
          $region22: #{deconv3d_forward.2} parent=19 // pred_check_branch
            %132 = sbr.rel (0) target = $region24
          $region23: #{deconv3d_forward.2} parent=19 // pred_region
            // Predicated region
            $region25: #{deconv3d_forward.2} parent=23 // pred_check
              _
            $region26: #{deconv3d_forward.2} parent=23 // pred_check_branch
              %134 = sbr.rel (0) target = $region28
            $region27: #{deconv3d_forward.2} parent=23 // pred_region
              loop: start=0, step=1, limit=1
              $region29: #{deconv3d_forward.2} parent=27 // loop_pre_header
                _
              $region30: #{deconv3d_forward.2} parent=27 // loop_header
                %s136 = sphi 0, %s140
                %p137 = scmp.ge.s32.totalorder %s136, 1
                %s141 = sphi %s130, %s130
                %s142 = sphi %s126, %s126
              $region31: #{deconv3d_forward.2} parent=27 // loop_header_branch
                %139 = sbr.rel (%p137) target = $region35
              $region32: #{deconv3d_forward.2} parent=27 // loop_body
                %v143 = vld [vmem:[%s141] sm:$0xff]
                %144 = vst [vmem:[%s142] sm:$0xff] %v143
                %v145 = vld [vmem:[%s141 + $0x8] sm:$0xff]
                %146 = vst [vmem:[%s142 + $0x8] sm:$0xff] %v145
                %v147 = vld [vmem:[%s141 + $0x10] sm:$0xff]
                %148 = vst [vmem:[%s142 + $0x10] sm:$0xff] %v147
                %v149 = vld [vmem:[%s141 + $0x18] sm:$0xff]
                %150 = vst [vmem:[%s142 + $0x18] sm:$0xff] %v149
                %v151 = vld [vmem:[%s141 + $0x40] sm:$0xff]
                %152 = vst [vmem:[%s142 + $0x20] sm:$0xff] %v151
                %v153 = vld [vmem:[%s141 + $0x48] sm:$0xff]
                %154 = vst [vmem:[%s142 + $0x28] sm:$0xff] %v153
                %v155 = vld [vmem:[%s141 + $0x50] sm:$0xff]
                %156 = vst [vmem:[%s142 + $0x30] sm:$0xff] %v155
                %v157 = vld [vmem:[%s141 + $0x58] sm:$0xff]
                %158 = vst [vmem:[%s142 + $0x38] sm:$0xff] %v157
                %v159 = vld [vmem:[%s141 + $0x80] sm:$0xff]
                %160 = vst [vmem:[%s142 + $0x40] sm:$0xff] %v159
                %v161 = vld [vmem:[%s141 + $0x88] sm:$0xff]
                %162 = vst [vmem:[%s142 + $0x48] sm:$0xff] %v161
                %v163 = vld [vmem:[%s141 + $0x90] sm:$0xff]
                %164 = vst [vmem:[%s142 + $0x50] sm:$0xff] %v163
                %v165 = vld [vmem:[%s141 + $0x98] sm:$0xff]
                %166 = vst [vmem:[%s142 + $0x58] sm:$0xff] %v165
                %v167 = vld [vmem:[%s141 + $0xc0] sm:$0xff]
                %168 = vst [vmem:[%s142 + $0x60] sm:$0xff] %v167
                %v169 = vld [vmem:[%s141 + $0xc8] sm:$0xff]
                %170 = vst [vmem:[%s142 + $0x68] sm:$0xff] %v169
                %v171 = vld [vmem:[%s141 + $0xd0] sm:$0xff]
                %172 = vst [vmem:[%s142 + $0x70] sm:$0xff] %v171
                %v173 = vld [vmem:[%s141 + $0xd8] sm:$0xff]
                %174 = vst [vmem:[%s142 + $0x78] sm:$0xff] %v173
              $region33: #{deconv3d_forward.2} parent=27 // loop_footer
                %s140 = sadd.s32 1, %s136
              $region34: #{deconv3d_forward.2} parent=27 // loop_footer_branch
                %135 = sbr.rel target = $region30
              $region35: #{deconv3d_forward.2} parent=27 // loop_exit
                _
            $region28: #{deconv3d_forward.2} parent=23 // pred_fallthru
              _
            // Predicated region
            $region36: #{deconv3d_forward.2} parent=23 // pred_check
              _
            $region37: #{deconv3d_forward.2} parent=23 // pred_check_branch
              %176 = sbr.rel target = $region39
            $region38: #{deconv3d_forward.2} parent=23 // pred_region
              _
            $region39: #{deconv3d_forward.2} parent=23 // pred_fallthru
              _
          $region24: #{deconv3d_forward.2} parent=19 // pred_fallthru
            _
          %177 = vnop
        $region20: #{deconv3d_forward.2} parent=15 // pred_fallthru
          _
      $region16: #{deconv3d_forward.2} parent=5 // pred_fallthru
        _
      %p178 = scmp.le.s32.totalorder 1, %s9
      %p179 = scmp.lt.s32.totalorder %s9, 3
      %p180 = pnand %p178, %p179
      %p181 = pneg %p180
      // Predicated region
      $region40: #{deconv3d_forward.2} parent=5 // pred_check
        _
      $region41: #{deconv3d_forward.2} parent=5 // pred_check_branch
        %183 = sbr.rel (%p180) target = $region43
      $region42: #{deconv3d_forward.2} parent=5 // pred_region
        %s184 = ssub.s32 %s9, 1
        %s185 = sand.u32 %s36, 1
        %s186 = sand.u32 %s36, 1
        %s187 = smul.addr %s186, 128
        %s188 = scalar_lea.vmem [#allocation2], %s187
        // Predicated region
        $region44: #{deconv3d_forward.2} parent=42 // pred_check
          %p189 = pneg %p49
        $region45: #{deconv3d_forward.2} parent=42 // pred_check_branch
          %191 = sbr.rel (%p189) target = $region47
        $region46: #{deconv3d_forward.2} parent=42 // pred_region
          _
        $region47: #{deconv3d_forward.2} parent=42 // pred_fallthru
          _
        %s192 = sand.u32 %s36, 1
        %s193 = sand.u32 %s36, 1
        %s194 = smul.addr %s193, 128
        %s195 = scalar_lea.vmem [#allocation2], %s194
        %p196 = pneg %p49
        %p197 = pneg %p46
        %p198 = pneg %p75
        %p199 = pneg %p72
        %s200 = smul.u32 4, %s18
        %p201 = scmp.lt.s32.totalorder %s200, 7
        %s202 = scalar_select %p201, %s200, 7
        %s203 = smul.addr %s202, 8
        %s204 = scalar_lea.vmem %s1, %s203
        %p205 = pneg %p101
        %p206 = pneg %p98
        %s207 = smul.u32 4, %s18
        %p208 = scmp.lt.s32.totalorder %s207, 7
        %s209 = scalar_select %p208, %s207, 7
        %s210 = smul.addr %s209, 8
        %s211 = scalar_lea.vmem %s2, %s210
        %s212 = sadd.s32 %s18, %s19
        %s213 = smul.u32 8, %s212
        %s214 = smul.u32 4, %s18
        %p215 = scmp.lt.s32.totalorder %s214, 7
        %s216 = scalar_select %p215, %s214, 7
        %s217 = smul.addr %s216, 8
        %s218 = scalar_lea.vmem %s1, %s217
        %s219 = smul.u32 4, %s18
        %s220 = smul.u32 4, %s18
        %p221 = scmp.lt.s32.totalorder %s220, 7
        %s222 = scalar_select %p221, %s220, 7
        %s223 = smul.addr %s222, 8
        %s224 = scalar_lea.vmem %s2, %s223
        %s225 = smul.u32 4, %s18
        %p227 = scmp.eq.s32.totalorder %s19, 0
        // Predicated region
        $region48: #{deconv3d_forward.2} parent=42 // pred_check
          %p228 = pneg %p227
        $region49: #{deconv3d_forward.2} parent=42 // pred_check_branch
          %230 = sbr.rel (%p228) target = $region51
        $region50: #{deconv3d_forward.2} parent=42 // pred_region
          %vm231 = vcmask 261120
          %232 = vst.msk [vmem:[%s218] sm:$0xff] %vm231, 0.0
          %233 = vst.msk [vmem:[%s218 + $0x8] sm:$0xff] %vm231, 0.0
          %234 = vst.msk [vmem:[%s218 + $0x10] sm:$0xff] %vm231, 0.0
          %235 = vst.msk [vmem:[%s218 + $0x18] sm:$0xff] %vm231, 0.0
          %vm236 = vcmask 7168
          %237 = vst.msk [vmem:[%s224] sm:$0xff] %vm236, 0.0
          %238 = vst.msk [vmem:[%s224 + $0x8] sm:$0xff] %vm236, 0.0
          %239 = vst.msk [vmem:[%s224 + $0x10] sm:$0xff] %vm236, 0.0
          %240 = vst.msk [vmem:[%s224 + $0x18] sm:$0xff] %vm236, 0.0
        $region51: #{deconv3d_forward.2} parent=42 // pred_fallthru
          _
        %v241 = vld [vmem:[%s188] sm:$0xff]
        %v242 = vld [vmem:[%s188 + $0x8] sm:$0xff]
        %v243 = vld [vmem:[%s188 + $0x10] sm:$0xff]
        %v244 = vld [vmem:[%s188 + $0x18] sm:$0xff]
        %v245 = vld [vmem:[%s188 + $0x20] sm:$0xff]
        %v246 = vld [vmem:[%s188 + $0x28] sm:$0xff]
        %v247 = vld [vmem:[%s188 + $0x30] sm:$0xff]
        %v248 = vld [vmem:[%s188 + $0x38] sm:$0xff]
        %v249 = vld [vmem:[%s188 + $0x40] sm:$0xff]
        %v250 = vld [vmem:[%s188 + $0x48] sm:$0xff]
        %v251 = vld [vmem:[%s188 + $0x50] sm:$0xff]
        %v252 = vld [vmem:[%s188 + $0x58] sm:$0xff]
        %v253 = vld [vmem:[%s188 + $0x60] sm:$0xff]
        %v254 = vld [vmem:[%s188 + $0x68] sm:$0xff]
        %v255 = vld [vmem:[%s188 + $0x70] sm:$0xff]
        %v256 = vld [vmem:[%s188 + $0x78] sm:$0xff]
        %v257 = vld [vmem:[%s218] sm:$0xff]
        %v258 = vld [vmem:[%s218 + $0x8] sm:$0xff]
        %v259 = vld [vmem:[%s218 + $0x10] sm:$0xff]
        %v260 = vld [vmem:[%s218 + $0x18] sm:$0xff]
        %v277 = vunpack.c.l.b16 %v241
        %v278 = vunpack.c.h.b16 %v241
        %v279 = vunpack.c.l.b16 %v242
        %v280 = vunpack.c.h.b16 %v242
        %v281 = vunpack.c.l.b16 %v243
        %v282 = vunpack.c.h.b16 %v243
        %v283 = vunpack.c.l.b16 %v244
        %v284 = vunpack.c.h.b16 %v244
        %v285 = vunpack.c.l.b16 %v245
        %v286 = vunpack.c.h.b16 %v245
        %v287 = vunpack.c.l.b16 %v246
        %v288 = vunpack.c.h.b16 %v246
        %v289 = vunpack.c.l.b16 %v247
        %v290 = vunpack.c.h.b16 %v247
        %v291 = vunpack.c.l.b16 %v248
        %v292 = vunpack.c.h.b16 %v248
        %v293 = vunpack.c.l.b16 %v249
        %v294 = vunpack.c.h.b16 %v249
        %v295 = vunpack.c.l.b16 %v250
        %v296 = vunpack.c.h.b16 %v250
        %v297 = vunpack.c.l.b16 %v251
        %v298 = vunpack.c.h.b16 %v251
        %v299 = vunpack.c.l.b16 %v252
        %v300 = vunpack.c.h.b16 %v252
        %v301 = vunpack.c.l.b16 %v253
        %v302 = vunpack.c.h.b16 %v253
        %v303 = vunpack.c.l.b16 %v254
        %v304 = vunpack.c.h.b16 %v254
        %v305 = vunpack.c.l.b16 %v255
        %v306 = vunpack.c.h.b16 %v255
        %v307 = vunpack.c.l.b16 %v256
        %v308 = vunpack.c.h.b16 %v256
        %v309 = vpack.c.b16 %v285, %v277
        %v310 = vpack.c.b16 %v286, %v278
        %v311 = vpack.c.b16 %v287, %v279
        %v312 = vpack.c.b16 %v288, %v280
        %v313 = vpack.c.b16 %v289, %v281
        %v314 = vpack.c.b16 %v290, %v282
        %v315 = vpack.c.b16 %v291, %v283
        %v316 = vpack.c.b16 %v292, %v284
        %v317 = vpack.c.b16 %v301, %v293
        %v318 = vpack.c.b16 %v302, %v294
        %v319 = vpack.c.b16 %v303, %v295
        %v320 = vpack.c.b16 %v304, %v296
        %v321 = vpack.c.b16 %v305, %v297
        %v322 = vpack.c.b16 %v306, %v298
        %v323 = vpack.c.b16 %v307, %v299
        %v324 = vpack.c.b16 %v308, %v300
        %341 = vmatprep.subr.bf16.mxu0 %v310
        %342 = vmatpush1.bf16.xpose.msra.mxu0 %v309
        %343 = vmatprep.subr.bf16.mxu0 %v318
        %344 = vmatpush1.bf16.xpose.msra.mxu0 %v317
        %345 = vmatprep.subr.bf16.mxu0 0
        %346 = vmatpush1.bf16.xpose.msra.mxu0 0
        %347 = vmatprep.subr.bf16.mxu0 0
        %348 = vmatpush1.bf16.xpose.msra.mxu0 0
        %349 = vmatprep.subr.bf16.mxu0 0
        %350 = vmatpush1.bf16.xpose.msra.mxu0 0
        %351 = vmatprep.subr.bf16.mxu0 0
        %352 = vmatpush1.bf16.xpose.msra.mxu0 0
        %353 = vmatprep.subr.bf16.mxu0 0
        %354 = vmatpush1.bf16.xpose.msra.mxu0 0
        %355 = vmatprep.subr.bf16.mxu0 0
        %356 = vmatpush1.bf16.xpose.msra.mxu0 0
        %357 = vmatprep.subr.bf16.mxu0 0
        %358 = vmatpush1.bf16.xpose.msra.mxu0 0
        %359 = vmatprep.subr.bf16.mxu0 0
        %360 = vmatpush1.bf16.xpose.msra.mxu0 0
        %361 = vmatprep.subr.bf16.mxu0 0
        %362 = vmatpush1.bf16.xpose.msra.mxu0 0
        %363 = vmatprep.subr.bf16.mxu0 0
        %364 = vmatpush1.bf16.xpose.msra.mxu0 0
        %365 = vmatprep.subr.bf16.mxu0 0
        %366 = vmatpush1.bf16.xpose.msra.mxu0 0
        %367 = vmatprep.subr.bf16.mxu0 0
        %368 = vmatpush1.bf16.xpose.msra.mxu0 0
        %369 = vmatprep.subr.bf16.mxu0 0
        %370 = vmatpush1.bf16.xpose.msra.mxu0 0
        %371 = vmatprep.subr.bf16.mxu0 0
        %372 = vmatpush1.bf16.xpose.msra.mxu0 0
        %373 = vmatprep.mubr.bf16.mxu0 %v310
        %374 = vmatmul.mubr.bf16.gmra.mrb[0].mxu0 %v309
        %v375 = vpop.f32.mrb[0].mxu0
        %v376 = vadd.f32 0.0, %v375
        %v377 = vpop.f32.mrb[0].mxu0
        %v378 = vpop.f32.mrb[0].mxu0
        %v379 = vadd.f32 0.0, %v378
        %v380 = vpop.f32.mrb[0].mxu0
        %381 = vmatprep.mubr.bf16.mxu0 %v318
        %382 = vmatmul.mubr.bf16.gmra.mrb[0].mxu0 %v317
        %v383 = vpop.f32.mrb[0].mxu0
        %v384 = vadd.f32 0.0, %v383
        %v385 = vpop.f32.mrb[0].mxu0
        %v386 = vpop.f32.mrb[0].mxu0
        %v387 = vadd.f32 0.0, %v386
        %v388 = vpop.f32.mrb[0].mxu0
        %389 = vdwg.mxu0
        %390 = vmatprep.subr.bf16.mxu0 %v312
        %391 = vmatpush1.bf16.xpose.msra.mxu0 %v311
        %392 = vmatprep.subr.bf16.mxu0 %v320
        %393 = vmatpush1.bf16.xpose.msra.mxu0 %v319
        %394 = vmatprep.subr.bf16.mxu0 0
        %395 = vmatpush1.bf16.xpose.msra.mxu0 0
        %396 = vmatprep.subr.bf16.mxu0 0
        %397 = vmatpush1.bf16.xpose.msra.mxu0 0
        %398 = vmatprep.subr.bf16.mxu0 0
        %399 = vmatpush1.bf16.xpose.msra.mxu0 0
        %400 = vmatprep.subr.bf16.mxu0 0
        %401 = vmatpush1.bf16.xpose.msra.mxu0 0
        %402 = vmatprep.subr.bf16.mxu0 0
        %403 = vmatpush1.bf16.xpose.msra.mxu0 0
        %404 = vmatprep.subr.bf16.mxu0 0
        %405 = vmatpush1.bf16.xpose.msra.mxu0 0
        %406 = vmatprep.subr.bf16.mxu0 0
        %407 = vmatpush1.bf16.xpose.msra.mxu0 0
        %408 = vmatprep.subr.bf16.mxu0 0
        %409 = vmatpush1.bf16.xpose.msra.mxu0 0
        %410 = vmatprep.subr.bf16.mxu0 0
        %411 = vmatpush1.bf16.xpose.msra.mxu0 0
        %412 = vmatprep.subr.bf16.mxu0 0
        %413 = vmatpush1.bf16.xpose.msra.mxu0 0
        %414 = vmatprep.subr.bf16.mxu0 0
        %415 = vmatpush1.bf16.xpose.msra.mxu0 0
        %416 = vmatprep.subr.bf16.mxu0 0
        %417 = vmatpush1.bf16.xpose.msra.mxu0 0
        %418 = vmatprep.subr.bf16.mxu0 0
        %419 = vmatpush1.bf16.xpose.msra.mxu0 0
        %420 = vmatprep.subr.bf16.mxu0 0
        %421 = vmatpush1.bf16.xpose.msra.mxu0 0
        %422 = vmatprep.mubr.bf16.mxu0 %v312
        %423 = vmatmul.mubr.bf16.gmra.mrb[0].mxu0 %v311
        %v424 = vpop.f32.mrb[0].mxu0
        %v425 = vadd.f32 %v376, %v424
        %v426 = vpop.f32.mrb[0].mxu0
        %v427 = vpop.f32.mrb[0].mxu0
        %v428 = vadd.f32 %v379, %v427
        %v429 = vpop.f32.mrb[0].mxu0
        %430 = vmatprep.mubr.bf16.mxu0 %v320
        %431 = vmatmul.mubr.bf16.gmra.mrb[0].mxu0 %v319
        %v432 = vpop.f32.mrb[0].mxu0
        %v433 = vadd.f32 %v384, %v432
        %v434 = vpop.f32.mrb[0].mxu0
        %v435 = vpop.f32.mrb[0].mxu0
        %v436 = vadd.f32 %v387, %v435
        %v437 = vpop.f32.mrb[0].mxu0
        %438 = vdwg.mxu0
        %439 = vmatprep.subr.bf16.mxu0 %v314
        %440 = vmatpush1.bf16.xpose.msra.mxu0 %v313
        %441 = vmatprep.subr.bf16.mxu0 %v322
        %442 = vmatpush1.bf16.xpose.msra.mxu0 %v321
        %443 = vmatprep.subr.bf16.mxu0 0
        %444 = vmatpush1.bf16.xpose.msra.mxu0 0
        %445 = vmatprep.subr.bf16.mxu0 0
        %446 = vmatpush1.bf16.xpose.msra.mxu0 0
        %447 = vmatprep.subr.bf16.mxu0 0
        %448 = vmatpush1.bf16.xpose.msra.mxu0 0
        %449 = vmatprep.subr.bf16.mxu0 0
        %450 = vmatpush1.bf16.xpose.msra.mxu0 0
        %451 = vmatprep.subr.bf16.mxu0 0
        %452 = vmatpush1.bf16.xpose.msra.mxu0 0
        %453 = vmatprep.subr.bf16.mxu0 0
        %454 = vmatpush1.bf16.xpose.msra.mxu0 0
        %455 = vmatprep.subr.bf16.mxu0 0
        %456 = vmatpush1.bf16.xpose.msra.mxu0 0
        %457 = vmatprep.subr.bf16.mxu0 0
        %458 = vmatpush1.bf16.xpose.msra.mxu0 0
        %459 = vmatprep.subr.bf16.mxu0 0
        %460 = vmatpush1.bf16.xpose.msra.mxu0 0
        %461 = vmatprep.subr.bf16.mxu0 0
        %462 = vmatpush1.bf16.xpose.msra.mxu0 0
        %463 = vmatprep.subr.bf16.mxu0 0
        %464 = vmatpush1.bf16.xpose.msra.mxu0 0
        %465 = vmatprep.subr.bf16.mxu0 0
        %466 = vmatpush1.bf16.xpose.msra.mxu0 0
        %467 = vmatprep.subr.bf16.mxu0 0
        %468 = vmatpush1.bf16.xpose.msra.mxu0 0
        %469 = vmatprep.subr.bf16.mxu0 0
        %470 = vmatpush1.bf16.xpose.msra.mxu0 0
        %471 = vmatprep.mubr.bf16.mxu0 %v314
        %472 = vmatmul.mubr.bf16.gmra.mrb[0].mxu0 %v313
        %v473 = vpop.f32.mrb[0].mxu0
        %v474 = vadd.f32 %v425, %v473
        %v475 = vpop.f32.mrb[0].mxu0
        %v476 = vpop.f32.mrb[0].mxu0
        %v477 = vadd.f32 %v428, %v476
        %v478 = vpop.f32.mrb[0].mxu0
        %479 = vmatprep.mubr.bf16.mxu0 %v322
        %480 = vmatmul.mubr.bf16.gmra.mrb[0].mxu0 %v321
        %v481 = vpop.f32.mrb[0].mxu0
        %v482 = vadd.f32 %v433, %v481
        %v483 = vpop.f32.mrb[0].mxu0
        %v484 = vpop.f32.mrb[0].mxu0
        %v485 = vadd.f32 %v436, %v484
        %v486 = vpop.f32.mrb[0].mxu0
        %487 = vdwg.mxu0
        %488 = vmatprep.subr.bf16.mxu0 %v316
        %489 = vmatpush1.bf16.xpose.msra.mxu0 %v315
        %490 = vmatprep.subr.bf16.mxu0 %v324
        %491 = vmatpush1.bf16.xpose.msra.mxu0 %v323
        %492 = vmatprep.subr.bf16.mxu0 0
        %493 = vmatpush1.bf16.xpose.msra.mxu0 0
        %494 = vmatprep.subr.bf16.mxu0 0
        %495 = vmatpush1.bf16.xpose.msra.mxu0 0
        %496 = vmatprep.subr.bf16.mxu0 0
        %497 = vmatpush1.bf16.xpose.msra.mxu0 0
        %498 = vmatprep.subr.bf16.mxu0 0
        %499 = vmatpush1.bf16.xpose.msra.mxu0 0
        %500 = vmatprep.subr.bf16.mxu0 0
        %501 = vmatpush1.bf16.xpose.msra.mxu0 0
        %502 = vmatprep.subr.bf16.mxu0 0
        %503 = vmatpush1.bf16.xpose.msra.mxu0 0
        %504 = vmatprep.subr.bf16.mxu0 0
        %505 = vmatpush1.bf16.xpose.msra.mxu0 0
        %506 = vmatprep.subr.bf16.mxu0 0
        %507 = vmatpush1.bf16.xpose.msra.mxu0 0
        %508 = vmatprep.subr.bf16.mxu0 0
        %509 = vmatpush1.bf16.xpose.msra.mxu0 0
        %510 = vmatprep.subr.bf16.mxu0 0
        %511 = vmatpush1.bf16.xpose.msra.mxu0 0
        %512 = vmatprep.subr.bf16.mxu0 0
        %513 = vmatpush1.bf16.xpose.msra.mxu0 0
        %514 = vmatprep.subr.bf16.mxu0 0
        %515 = vmatpush1.bf16.xpose.msra.mxu0 0
        %516 = vmatprep.subr.bf16.mxu0 0
        %517 = vmatpush1.bf16.xpose.msra.mxu0 0
        %518 = vmatprep.subr.bf16.mxu0 0
        %519 = vmatpush1.bf16.xpose.msra.mxu0 0
        %520 = vmatprep.mubr.bf16.mxu0 %v316
        %521 = vmatmul.mubr.bf16.gmra.mrb[0].mxu0 %v315
        %v522 = vpop.f32.mrb[0].mxu0
        %v523 = vadd.f32 %v474, %v522
        %v524 = vpop.f32.mrb[0].mxu0
        %v525 = vpop.f32.mrb[0].mxu0
        %v526 = vadd.f32 %v477, %v525
        %v527 = vpop.f32.mrb[0].mxu0
        %528 = vmatprep.mubr.bf16.mxu0 %v324
        %529 = vmatmul.mubr.bf16.gmra.mrb[0].mxu0 %v323
        %v530 = vpop.f32.mrb[0].mxu0
        %v531 = vadd.f32 %v482, %v530
        %v532 = vpop.f32.mrb[0].mxu0
        %v533 = vpop.f32.mrb[0].mxu0
        %v534 = vadd.f32 %v485, %v533
        %v535 = vpop.f32.mrb[0].mxu0
        %536 = vdwg.mxu0
        %v537 = vadd.f32 %v257, %v523
        %v538 = vadd.f32 %v258, %v526
        %v539 = vadd.f32 %v259, %v531
        %v540 = vadd.f32 %v260, %v534
        %vm541 = vcmask 261120
        %542 = vst.msk [vmem:[%s218] sm:$0xff] %vm541, %v537
        %543 = vst.msk [vmem:[%s218 + $0x8] sm:$0xff] %vm541, %v538
        %544 = vst.msk [vmem:[%s218 + $0x10] sm:$0xff] %vm541, %v539
        %545 = vst.msk [vmem:[%s218 + $0x18] sm:$0xff] %vm541, %v540
        %v546 = vld [vmem:[%s224] sm:$0xff]
        %v547 = vld [vmem:[%s224 + $0x8] sm:$0xff]
        %v548 = vld [vmem:[%s224 + $0x10] sm:$0xff]
        %v549 = vld [vmem:[%s224 + $0x18] sm:$0xff]
        %v550 = vunpack.c.l.bf16 %v241
        %v551 = vunpack.c.h.bf16 %v241
        %v552 = vunpack.c.l.bf16 %v242
        %v553 = vunpack.c.h.bf16 %v242
        %v554 = vunpack.c.l.bf16 %v243
        %v555 = vunpack.c.h.bf16 %v243
        %v556 = vunpack.c.l.bf16 %v244
        %v557 = vunpack.c.h.bf16 %v244
        %v558 = vunpack.c.l.bf16 %v245
        %v559 = vunpack.c.h.bf16 %v245
        %v560 = vunpack.c.l.bf16 %v246
        %v561 = vunpack.c.h.bf16 %v246
        %v562 = vunpack.c.l.bf16 %v247
        %v563 = vunpack.c.h.bf16 %v247
        %v564 = vunpack.c.l.bf16 %v248
        %v565 = vunpack.c.h.bf16 %v248
        %v566 = vunpack.c.l.bf16 %v249
        %v567 = vunpack.c.h.bf16 %v249
        %v568 = vunpack.c.l.bf16 %v250
        %v569 = vunpack.c.h.bf16 %v250
        %v570 = vunpack.c.l.bf16 %v251
        %v571 = vunpack.c.h.bf16 %v251
        %v572 = vunpack.c.l.bf16 %v252
        %v573 = vunpack.c.h.bf16 %v252
        %v574 = vunpack.c.l.bf16 %v253
        %v575 = vunpack.c.h.bf16 %v253
        %v576 = vunpack.c.l.bf16 %v254
        %v577 = vunpack.c.h.bf16 %v254
        %v578 = vunpack.c.l.bf16 %v255
        %v579 = vunpack.c.h.bf16 %v255
        %v580 = vunpack.c.l.bf16 %v256
        %v581 = vunpack.c.h.bf16 %v256
        %v582 = vadd.f32 %v550, %v551
        %v583 = vadd.f32 %v582, %v552
        %v584 = vadd.f32 %v583, %v553
        %v585 = vadd.f32 %v584, %v554
        %v586 = vadd.f32 %v585, %v555
        %v587 = vadd.f32 %v586, %v556
        %v588 = vadd.f32 %v587, %v557
        %589 = vadd.xlane.f32.xlu0 %v588
        %v590 = vpop.xlane.xlu0 %589
        %v591 = vadd.f32 %v558, %v559
        %v592 = vadd.f32 %v591, %v560
        %v593 = vadd.f32 %v592, %v561
        %v594 = vadd.f32 %v593, %v562
        %v595 = vadd.f32 %v594, %v563
        %v596 = vadd.f32 %v595, %v564
        %v597 = vadd.f32 %v596, %v565
        %598 = vadd.xlane.f32.xlu0 %v597
        %v599 = vpop.xlane.xlu0 %598
        %v600 = vadd.f32 %v566, %v567
        %v601 = vadd.f32 %v600, %v568
        %v602 = vadd.f32 %v601, %v569
        %v603 = vadd.f32 %v602, %v570
        %v604 = vadd.f32 %v603, %v571
        %v605 = vadd.f32 %v604, %v572
        %v606 = vadd.f32 %v605, %v573
        %607 = vadd.xlane.f32.xlu0 %v606
        %v608 = vpop.xlane.xlu0 %607
        %v609 = vadd.f32 %v574, %v575
        %v610 = vadd.f32 %v609, %v576
        %v611 = vadd.f32 %v610, %v577
        %v612 = vadd.f32 %v611, %v578
        %v613 = vadd.f32 %v612, %v579
        %v614 = vadd.f32 %v613, %v580
        %v615 = vadd.f32 %v614, %v581
        %616 = vadd.xlane.f32.xlu0 %v615
        %v617 = vpop.xlane.xlu0 %616
        %v618 = vadd.f32 %v546, %v590
        %v619 = vadd.f32 %v547, %v599
        %v620 = vadd.f32 %v548, %v608
        %v621 = vadd.f32 %v549, %v617
        %vm622 = vcmask 7168
        %623 = vst.msk [vmem:[%s224] sm:$0xff] %vm622, %v618
        %624 = vst.msk [vmem:[%s224 + $0x8] sm:$0xff] %vm622, %v619
        %625 = vst.msk [vmem:[%s224 + $0x10] sm:$0xff] %vm622, %v620
        %626 = vst.msk [vmem:[%s224 + $0x18] sm:$0xff] %vm622, %v621
        %s627 = smul.u32 4, %s18
        %p628 = scmp.lt.s32.totalorder %s627, 7
        %s629 = scalar_select %p628, %s627, 7
        %s630 = smul.addr %s629, 8
        %s631 = scalar_lea.vmem %s1, %s630
        %s632 = smul.u32 4, %s18
        %p633 = scmp.lt.s32.totalorder %s632, 7
        %s634 = scalar_select %p633, %s632, 7
        %s635 = smul.addr %s634, 8
        %s636 = scalar_lea.vmem %s2, %s635
        // Predicated region
        $region52: #{deconv3d_forward.2} parent=42 // pred_check
          %p637 = pneg %p72
        $region53: #{deconv3d_forward.2} parent=42 // pred_check_branch
          %639 = sbr.rel (%p637) target = $region55
        $region54: #{deconv3d_forward.2} parent=42 // pred_region
          %s640 = smul.u32 4, %s18
        $region55: #{deconv3d_forward.2} parent=42 // pred_fallthru
          _
        // Predicated region
        $region56: #{deconv3d_forward.2} parent=42 // pred_check
          %p641 = pneg %p98
        $region57: #{deconv3d_forward.2} parent=42 // pred_check_branch
          %643 = sbr.rel (%p641) target = $region59
        $region58: #{deconv3d_forward.2} parent=42 // pred_region
          %s644 = smul.u32 4, %s18
        $region59: #{deconv3d_forward.2} parent=42 // pred_fallthru
          _
      $region43: #{deconv3d_forward.2} parent=5 // pred_fallthru
        _
      %p645 = scmp.le.s32.totalorder 2, %s9
      // Predicated region
      $region60: #{deconv3d_forward.2} parent=5 // pred_check
        %p646 = pneg %p645
      $region61: #{deconv3d_forward.2} parent=5 // pred_check_branch
        %648 = sbr.rel (%p646) target = $region63
      $region62: #{deconv3d_forward.2} parent=5 // pred_region
        %s649 = ssub.s32 %s9, 2
        // Predicated region
        $region64: #{deconv3d_forward.2} parent=62 // pred_check
          %p650 = pneg %p78
        $region65: #{deconv3d_forward.2} parent=62 // pred_check_branch
          %652 = sbr.rel (%p650) target = $region67
        $region66: #{deconv3d_forward.2} parent=62 // pred_region
          %s653 = smul.u32 4, %s20
          %p654 = scmp.lt.s32.totalorder %s653, 7
          %s655 = scalar_select %p654, %s653, 7
          %s656 = smul.addr %s655, 8
          %s657 = scalar_lea.vmem %s1, %s656
        $region67: #{deconv3d_forward.2} parent=62 // pred_fallthru
          _
        // Predicated region
        $region68: #{deconv3d_forward.2} parent=62 // pred_check
          %p658 = pneg %p104
        $region69: #{deconv3d_forward.2} parent=62 // pred_check_branch
          %660 = sbr.rel (%p658) target = $region71
        $region70: #{deconv3d_forward.2} parent=62 // pred_region
          %s661 = smul.u32 4, %s20
          %p662 = scmp.lt.s32.totalorder %s661, 7
          %s663 = scalar_select %p662, %s661, 7
          %s664 = smul.addr %s663, 8
          %s665 = scalar_lea.vmem %s2, %s664
        $region71: #{deconv3d_forward.2} parent=62 // pred_fallthru
          _
      $region63: #{deconv3d_forward.2} parent=5 // pred_fallthru
        _
    $region6: #{deconv3d_forward.2} parent=1 // loop_footer
      %s13 = sadd.s32 1, %s9
    $region7: #{deconv3d_forward.2} parent=1 // loop_footer_branch
      %8 = sbr.rel target = $region3
    $region8: #{deconv3d_forward.2} parent=1 // loop_exit
      _

// kernel: deconv3d_forward.3
$region0: #{deconv3d_forward.3}
  #allocation0 [shape = 'u32[]', space=smem, size = 0x4, offset = 0x4, fixed_abs, tag = 'smem constant byte address 0x4 - core index']
  #allocation1 [shape = 'u32[144,128]{1,0:T(1,128)}', space=vmem, size = 0x12000, scoped, tag = 'internal scratch']
  %s0 = inlined_call_operand.vmem [shape: bf16[64,32], index: 0, kind: input, shape index: {}]
  %s1 = inlined_call_operand.vmem [shape: bf16[32,2048], index: 1, kind: input, shape index: {}]
  %s2 = inlined_call_operand.vmem [shape: f32[64,1], index: 2, kind: input, shape index: {}]
  %s3 = inlined_call_operand.vmem [shape: f32[64,1], index: 3, kind: input, shape index: {}]
  %s4 = inlined_call_operand.vmem [shape: bf16[64,1024], index: 4, kind: output, shape index: {}]
  %s5 = sld [smem:[#allocation0]]
  $region49: #{deconv3d_forward.3} parent=0
    _
  %s7 = ssub.s32 1, %s5
  %s8 = scalar_select 0, %s7, %s5
  $region1: #{deconv3d_forward.3} parent=0
    #allocation2 [shape = 'u8[65536]{0}', space=vmem, size = 0x10000, scoped, tag = 'input window, operand 1, single buffered']
    // Predicated region
    $region2: #{deconv3d_forward.3} parent=1 // pred_check
      _
    $region3: #{deconv3d_forward.3} parent=1 // pred_check_branch
      %10 = sbr.rel (0) target = $region5
    $region4: #{deconv3d_forward.3} parent=1 // pred_region
      _
    $region5: #{deconv3d_forward.3} parent=1 // pred_fallthru
      _
    // Predicated region
    $region6: #{deconv3d_forward.3} parent=1 // pred_check
      _
    $region7: #{deconv3d_forward.3} parent=1 // pred_check_branch
      %12 = sbr.rel (0) target = $region9
    $region8: #{deconv3d_forward.3} parent=1 // pred_region
      // Predicated region
      $region10: #{deconv3d_forward.3} parent=8 // pred_check
        _
      $region11: #{deconv3d_forward.3} parent=8 // pred_check_branch
        %14 = sbr.rel (0) target = $region13
      $region12: #{deconv3d_forward.3} parent=8 // pred_region
        // Predicated region
        $region14: #{deconv3d_forward.3} parent=12 // pred_check
          _
        $region15: #{deconv3d_forward.3} parent=12 // pred_check_branch
          %16 = sbr.rel (0) target = $region17
        $region16: #{deconv3d_forward.3} parent=12 // pred_region
          loop: start=0, step=1, limit=1
          $region18: #{deconv3d_forward.3} parent=16 // loop_pre_header
            _
          $region19: #{deconv3d_forward.3} parent=16 // loop_header
            %s18 = sphi 0, %s22
            %p19 = scmp.ge.s32.totalorder %s18, 1
            %s23 = sphi %s1, %s1
            %s24 = sphi [#allocation2], [#allocation2]
          $region20: #{deconv3d_forward.3} parent=16 // loop_header_branch
            %21 = sbr.rel (%p19) target = $region24
          $region21: #{deconv3d_forward.3} parent=16 // loop_body
            %v25 = vld [vmem:[%s23] sm:$0xff]
            %26 = vst [vmem:[%s24] sm:$0xff] %v25
            %v27 = vld [vmem:[%s23 + $0x8] sm:$0xff]
            %28 = vst [vmem:[%s24 + $0x8] sm:$0xff] %v27
            %v29 = vld [vmem:[%s23 + $0x10] sm:$0xff]
            %30 = vst [vmem:[%s24 + $0x10] sm:$0xff] %v29
            %v31 = vld [vmem:[%s23 + $0x18] sm:$0xff]
            %32 = vst [vmem:[%s24 + $0x18] sm:$0xff] %v31
            %v33 = vld [vmem:[%s23 + $0x40] sm:$0xff]
            %34 = vst [vmem:[%s24 + $0x20] sm:$0xff] %v33
            %v35 = vld [vmem:[%s23 + $0x48] sm:$0xff]
            %36 = vst [vmem:[%s24 + $0x28] sm:$0xff] %v35
            %v37 = vld [vmem:[%s23 + $0x50] sm:$0xff]
            %38 = vst [vmem:[%s24 + $0x30] sm:$0xff] %v37
            %v39 = vld [vmem:[%s23 + $0x58] sm:$0xff]
            %40 = vst [vmem:[%s24 + $0x38] sm:$0xff] %v39
            %v41 = vld [vmem:[%s23 + $0x80] sm:$0xff]
            %42 = vst [vmem:[%s24 + $0x40] sm:$0xff] %v41
            %v43 = vld [vmem:[%s23 + $0x88] sm:$0xff]
            %44 = vst [vmem:[%s24 + $0x48] sm:$0xff] %v43
            %v45 = vld [vmem:[%s23 + $0x90] sm:$0xff]
            %46 = vst [vmem:[%s24 + $0x50] sm:$0xff] %v45
            %v47 = vld [vmem:[%s23 + $0x98] sm:$0xff]
            %48 = vst [vmem:[%s24 + $0x58] sm:$0xff] %v47
            %v49 = vld [vmem:[%s23 + $0xc0] sm:$0xff]
            %50 = vst [vmem:[%s24 + $0x60] sm:$0xff] %v49
            %v51 = vld [vmem:[%s23 + $0xc8] sm:$0xff]
            %52 = vst [vmem:[%s24 + $0x68] sm:$0xff] %v51
            %v53 = vld [vmem:[%s23 + $0xd0] sm:$0xff]
            %54 = vst [vmem:[%s24 + $0x70] sm:$0xff] %v53
            %v55 = vld [vmem:[%s23 + $0xd8] sm:$0xff]
            %56 = vst [vmem:[%s24 + $0x78] sm:$0xff] %v55
          $region22: #{deconv3d_forward.3} parent=16 // loop_footer
            %s22 = sadd.s32 1, %s18
          $region23: #{deconv3d_forward.3} parent=16 // loop_footer_branch
            %17 = sbr.rel target = $region19
          $region24: #{deconv3d_forward.3} parent=16 // loop_exit
            _
        $region17: #{deconv3d_forward.3} parent=12 // pred_fallthru
          _
        // Predicated region
        $region25: #{deconv3d_forward.3} parent=12 // pred_check
          _
        $region26: #{deconv3d_forward.3} parent=12 // pred_check_branch
          %58 = sbr.rel target = $region28
        $region27: #{deconv3d_forward.3} parent=12 // pred_region
          _
        $region28: #{deconv3d_forward.3} parent=12 // pred_fallthru
          _
      $region13: #{deconv3d_forward.3} parent=8 // pred_fallthru
        _
      %59 = vnop
    $region9: #{deconv3d_forward.3} parent=1 // pred_fallthru
      _
    // Predicated region
    $region29: #{deconv3d_forward.3} parent=1 // pred_check
      _
    $region30: #{deconv3d_forward.3} parent=1 // pred_check_branch
      %61 = sbr.rel (0) target = $region32
    $region31: #{deconv3d_forward.3} parent=1 // pred_region
      _
    $region32: #{deconv3d_forward.3} parent=1 // pred_fallthru
      _
    // Predicated region
    $region33: #{deconv3d_forward.3} parent=1 // pred_check
      _
    $region34: #{deconv3d_forward.3} parent=1 // pred_check_branch
      %63 = sbr.rel (0) target = $region36
    $region35: #{deconv3d_forward.3} parent=1 // pred_region
      _
    $region36: #{deconv3d_forward.3} parent=1 // pred_fallthru
      _
    // Predicated region
    $region37: #{deconv3d_forward.3} parent=1 // pred_check
      _
    $region38: #{deconv3d_forward.3} parent=1 // pred_check_branch
      %65 = sbr.rel (0) target = $region40
    $region39: #{deconv3d_forward.3} parent=1 // pred_region
      _
    $region40: #{deconv3d_forward.3} parent=1 // pred_fallthru
      _
    %v67 = vld [vmem:[%s0] sm:$0xf]
    %v68 = vld [vmem:[%s0 + $0x4] sm:$0xf]
    %v69 = vld [vmem:[%s0 + $0x8] sm:$0xf]
    %v70 = vld [vmem:[%s0 + $0xc] sm:$0xf]
    %v71 = vld [vmem:[%s0 + $0x10] sm:$0xf]
    %v72 = vld [vmem:[%s0 + $0x14] sm:$0xf]
    %v73 = vld [vmem:[%s0 + $0x18] sm:$0xf]
    %v74 = vld [vmem:[%s0 + $0x1c] sm:$0xf]
    %v75 = vld [vmem:[#allocation2] sm:$0xff]
    %v76 = vld [vmem:[#allocation2 + $0x8] sm:$0xff]
    %v77 = vld [vmem:[#allocation2 + $0x10] sm:$0xff]
    %v78 = vld [vmem:[#allocation2 + $0x18] sm:$0xff]
    %v79 = vld [vmem:[#allocation2 + $0x20] sm:$0xff]
    %v80 = vld [vmem:[#allocation2 + $0x28] sm:$0xff]
    %v81 = vld [vmem:[#allocation2 + $0x30] sm:$0xff]
    %v82 = vld [vmem:[#allocation2 + $0x38] sm:$0xff]
    %v83 = vld [vmem:[#allocation2 + $0x40] sm:$0xff]
    %v84 = vld [vmem:[#allocation2 + $0x48] sm:$0xff]
    %v85 = vld [vmem:[#allocation2 + $0x50] sm:$0xff]
    %v86 = vld [vmem:[#allocation2 + $0x58] sm:$0xff]
    %v87 = vld [vmem:[#allocation2 + $0x60] sm:$0xff]
    %v88 = vld [vmem:[#allocation2 + $0x68] sm:$0xff]
    %v89 = vld [vmem:[#allocation2 + $0x70] sm:$0xff]
    %v90 = vld [vmem:[#allocation2 + $0x78] sm:$0xff]
    %v99 = vunpack.c.l.b16 %v67
    %v100 = vunpack.c.l.b16 %v68
    %v101 = vunpack.c.l.b16 %v69
    %v102 = vunpack.c.l.b16 %v70
    %v103 = vunpack.c.l.b16 %v71
    %v104 = vunpack.c.l.b16 %v72
    %v105 = vunpack.c.l.b16 %v73
    %v106 = vunpack.c.l.b16 %v74
    %v107 = vpack.c.b16 %v100, %v99
    %v108 = vpack.c.b16 %v102, %v101
    %v109 = vpack.c.b16 %v104, %v103
    %v110 = vpack.c.b16 %v106, %v105
    %v127 = vunpack.c.l.b16 %v75
    %v128 = vunpack.c.h.b16 %v75
    %v129 = vunpack.c.l.b16 %v76
    %v130 = vunpack.c.h.b16 %v76
    %v131 = vunpack.c.l.b16 %v77
    %v132 = vunpack.c.h.b16 %v77
    %v133 = vunpack.c.l.b16 %v78
    %v134 = vunpack.c.h.b16 %v78
    %v135 = vunpack.c.l.b16 %v79
    %v136 = vunpack.c.h.b16 %v79
    %v137 = vunpack.c.l.b16 %v80
    %v138 = vunpack.c.h.b16 %v80
    %v139 = vunpack.c.l.b16 %v81
    %v140 = vunpack.c.h.b16 %v81
    %v141 = vunpack.c.l.b16 %v82
    %v142 = vunpack.c.h.b16 %v82
    %v143 = vunpack.c.l.b16 %v83
    %v144 = vunpack.c.h.b16 %v83
    %v145 = vunpack.c.l.b16 %v84
    %v146 = vunpack.c.h.b16 %v84
    %v147 = vunpack.c.l.b16 %v85
    %v148 = vunpack.c.h.b16 %v85
    %v149 = vunpack.c.l.b16 %v86
    %v150 = vunpack.c.h.b16 %v86
    %v151 = vunpack.c.l.b16 %v87
    %v152 = vunpack.c.h.b16 %v87
    %v153 = vunpack.c.l.b16 %v88
    %v154 = vunpack.c.h.b16 %v88
    %v155 = vunpack.c.l.b16 %v89
    %v156 = vunpack.c.h.b16 %v89
    %v157 = vunpack.c.l.b16 %v90
    %v158 = vunpack.c.h.b16 %v90
    %v159 = vpack.c.b16 %v135, %v127
    %v160 = vpack.c.b16 %v136, %v128
    %v161 = vpack.c.b16 %v137, %v129
    %v162 = vpack.c.b16 %v138, %v130
    %v163 = vpack.c.b16 %v139, %v131
    %v164 = vpack.c.b16 %v140, %v132
    %v165 = vpack.c.b16 %v141, %v133
    %v166 = vpack.c.b16 %v142, %v134
    %v167 = vpack.c.b16 %v151, %v143
    %v168 = vpack.c.b16 %v152, %v144
    %v169 = vpack.c.b16 %v153, %v145
    %v170 = vpack.c.b16 %v154, %v146
    %v171 = vpack.c.b16 %v155, %v147
    %v172 = vpack.c.b16 %v156, %v148
    %v173 = vpack.c.b16 %v157, %v149
    %v174 = vpack.c.b16 %v158, %v150
    %vm191 = vcmask 261120
    %v193 = vsel %vm191, %v107, 0
    %v196 = vsel %vm191, %v108, 0
    %v199 = vsel %vm191, %v109, 0
    %v202 = vsel %vm191, %v110, 0
    %204 = vmatprep.subr.bf16.mxu0 %v160
    %205 = vmatpush1.bf16.msra.mxu0 %v159
    %206 = vmatprep.subr.bf16.mxu0 %v168
    %207 = vmatpush1.bf16.msra.mxu0 %v167
    %208 = vmatprep.subr.bf16.mxu0 0
    %209 = vmatpush1.bf16.msra.mxu0 0
    %210 = vmatprep.subr.bf16.mxu0 0
    %211 = vmatpush1.bf16.msra.mxu0 0
    %212 = vmatprep.subr.bf16.mxu0 0
    %213 = vmatpush1.bf16.msra.mxu0 0
    %214 = vmatprep.subr.bf16.mxu0 0
    %215 = vmatpush1.bf16.msra.mxu0 0
    %216 = vmatprep.subr.bf16.mxu0 0
    %217 = vmatpush1.bf16.msra.mxu0 0
    %218 = vmatprep.subr.bf16.mxu0 0
    %219 = vmatpush1.bf16.msra.mxu0 0
    %220 = vmatprep.subr.bf16.mxu0 0
    %221 = vmatpush1.bf16.msra.mxu0 0
    %222 = vmatprep.subr.bf16.mxu0 0
    %223 = vmatpush1.bf16.msra.mxu0 0
    %224 = vmatprep.subr.bf16.mxu0 0
    %225 = vmatpush1.bf16.msra.mxu0 0
    %226 = vmatprep.subr.bf16.mxu0 0
    %227 = vmatpush1.bf16.msra.mxu0 0
    %228 = vmatprep.subr.bf16.mxu0 0
    %229 = vmatpush1.bf16.msra.mxu0 0
    %230 = vmatprep.subr.bf16.mxu0 0
    %231 = vmatpush1.bf16.msra.mxu0 0
    %232 = vmatprep.subr.bf16.mxu0 0
    %233 = vmatpush1.bf16.msra.mxu0 0
    %234 = vmatprep.subr.bf16.mxu0 0
    %235 = vmatpush1.bf16.msra.mxu0 0
    %236 = vmatprep.mubr.bf16.mxu0 0
    %237 = vmatmul.mubr.bf16.gmra.mrb[0].mxu0 %v193
    %v238 = vpop.f32.mrb[0].mxu0
    %v239 = vadd.f32 0.0, %v238
    %v240 = vpop.f32.mrb[0].mxu0
    %v241 = vadd.f32 0.0, %v240
    %v242 = vpop.f32.mrb[0].mxu0
    %v243 = vadd.f32 0.0, %v242
    %v244 = vpop.f32.mrb[0].mxu0
    %v245 = vadd.f32 0.0, %v244
    %246 = vmatprep.mubr.bf16.mxu0 0
    %247 = vmatmul.mubr.bf16.gmra.mrb[0].mxu0 %v196
    %v248 = vpop.f32.mrb[0].mxu0
    %v249 = vadd.f32 0.0, %v248
    %v250 = vpop.f32.mrb[0].mxu0
    %v251 = vadd.f32 0.0, %v250
    %v252 = vpop.f32.mrb[0].mxu0
    %v253 = vadd.f32 0.0, %v252
    %v254 = vpop.f32.mrb[0].mxu0
    %v255 = vadd.f32 0.0, %v254
    %256 = vmatprep.mubr.bf16.mxu0 0
    %257 = vmatmul.mubr.bf16.gmra.mrb[0].mxu0 %v199
    %v258 = vpop.f32.mrb[0].mxu0
    %v259 = vadd.f32 0.0, %v258
    %v260 = vpop.f32.mrb[0].mxu0
    %v261 = vadd.f32 0.0, %v260
    %v262 = vpop.f32.mrb[0].mxu0
    %v263 = vadd.f32 0.0, %v262
    %v264 = vpop.f32.mrb[0].mxu0
    %v265 = vadd.f32 0.0, %v264
    %266 = vmatprep.mubr.bf16.mxu0 0
    %267 = vmatmul.mubr.bf16.gmra.mrb[0].mxu0 %v202
    %v268 = vpop.f32.mrb[0].mxu0
    %v269 = vadd.f32 0.0, %v268
    %v270 = vpop.f32.mrb[0].mxu0
    %v271 = vadd.f32 0.0, %v270
    %v272 = vpop.f32.mrb[0].mxu0
    %v273 = vadd.f32 0.0, %v272
    %v274 = vpop.f32.mrb[0].mxu0
    %v275 = vadd.f32 0.0, %v274
    %276 = vdwg.mxu0
    %277 = vmatprep.subr.bf16.mxu0 %v162
    %278 = vmatpush1.bf16.msra.mxu0 %v161
    %279 = vmatprep.subr.bf16.mxu0 %v170
    %280 = vmatpush1.bf16.msra.mxu0 %v169
    %281 = vmatprep.subr.bf16.mxu0 0
    %282 = vmatpush1.bf16.msra.mxu0 0
    %283 = vmatprep.subr.bf16.mxu0 0
    %284 = vmatpush1.bf16.msra.mxu0 0
    %285 = vmatprep.subr.bf16.mxu0 0
    %286 = vmatpush1.bf16.msra.mxu0 0
    %287 = vmatprep.subr.bf16.mxu0 0
    %288 = vmatpush1.bf16.msra.mxu0 0
    %289 = vmatprep.subr.bf16.mxu0 0
    %290 = vmatpush1.bf16.msra.mxu0 0
    %291 = vmatprep.subr.bf16.mxu0 0
    %292 = vmatpush1.bf16.msra.mxu0 0
    %293 = vmatprep.subr.bf16.mxu0 0
    %294 = vmatpush1.bf16.msra.mxu0 0
    %295 = vmatprep.subr.bf16.mxu0 0
    %296 = vmatpush1.bf16.msra.mxu0 0
    %297 = vmatprep.subr.bf16.mxu0 0
    %298 = vmatpush1.bf16.msra.mxu0 0
    %299 = vmatprep.subr.bf16.mxu0 0
    %300 = vmatpush1.bf16.msra.mxu0 0
    %301 = vmatprep.subr.bf16.mxu0 0
    %302 = vmatpush1.bf16.msra.mxu0 0
    %303 = vmatprep.subr.bf16.mxu0 0
    %304 = vmatpush1.bf16.msra.mxu0 0
    %305 = vmatprep.subr.bf16.mxu0 0
    %306 = vmatpush1.bf16.msra.mxu0 0
    %307 = vmatprep.subr.bf16.mxu0 0
    %308 = vmatpush1.bf16.msra.mxu0 0
    %309 = vmatprep.mubr.bf16.mxu0 0
    %310 = vmatmul.mubr.bf16.gmra.mrb[0].mxu0 %v193
    %v311 = vpop.f32.mrb[0].mxu0
    %v312 = vadd.f32 0.0, %v311
    %v313 = vpop.f32.mrb[0].mxu0
    %v314 = vadd.f32 0.0, %v313
    %v315 = vpop.f32.mrb[0].mxu0
    %v316 = vadd.f32 0.0, %v315
    %v317 = vpop.f32.mrb[0].mxu0
    %v318 = vadd.f32 0.0, %v317
    %319 = vmatprep.mubr.bf16.mxu0 0
    %320 = vmatmul.mubr.bf16.gmra.mrb[0].mxu0 %v196
    %v321 = vpop.f32.mrb[0].mxu0
    %v322 = vadd.f32 0.0, %v321
    %v323 = vpop.f32.mrb[0].mxu0
    %v324 = vadd.f32 0.0, %v323
    %v325 = vpop.f32.mrb[0].mxu0
    %v326 = vadd.f32 0.0, %v325
    %v327 = vpop.f32.mrb[0].mxu0
    %v328 = vadd.f32 0.0, %v327
    %329 = vmatprep.mubr.bf16.mxu0 0
    %330 = vmatmul.mubr.bf16.gmra.mrb[0].mxu0 %v199
    %v331 = vpop.f32.mrb[0].mxu0
    %v332 = vadd.f32 0.0, %v331
    %v333 = vpop.f32.mrb[0].mxu0
    %v334 = vadd.f32 0.0, %v333
    %v335 = vpop.f32.mrb[0].mxu0
    %v336 = vadd.f32 0.0, %v335
    %v337 = vpop.f32.mrb[0].mxu0
    %v338 = vadd.f32 0.0, %v337
    %339 = vmatprep.mubr.bf16.mxu0 0
    %340 = vmatmul.mubr.bf16.gmra.mrb[0].mxu0 %v202
    %v341 = vpop.f32.mrb[0].mxu0
    %v342 = vadd.f32 0.0, %v341
    %v343 = vpop.f32.mrb[0].mxu0
    %v344 = vadd.f32 0.0, %v343
    %v345 = vpop.f32.mrb[0].mxu0
    %v346 = vadd.f32 0.0, %v345
    %v347 = vpop.f32.mrb[0].mxu0
    %v348 = vadd.f32 0.0, %v347
    %349 = vdwg.mxu0
    %350 = vmatprep.subr.bf16.mxu0 %v164
    %351 = vmatpush1.bf16.msra.mxu0 %v163
    %352 = vmatprep.subr.bf16.mxu0 %v172
    %353 = vmatpush1.bf16.msra.mxu0 %v171
    %354 = vmatprep.subr.bf16.mxu0 0
    %355 = vmatpush1.bf16.msra.mxu0 0
    %356 = vmatprep.subr.bf16.mxu0 0
    %357 = vmatpush1.bf16.msra.mxu0 0
    %358 = vmatprep.subr.bf16.mxu0 0
    %359 = vmatpush1.bf16.msra.mxu0 0
    %360 = vmatprep.subr.bf16.mxu0 0
    %361 = vmatpush1.bf16.msra.mxu0 0
    %362 = vmatprep.subr.bf16.mxu0 0
    %363 = vmatpush1.bf16.msra.mxu0 0
    %364 = vmatprep.subr.bf16.mxu0 0
    %365 = vmatpush1.bf16.msra.mxu0 0
    %366 = vmatprep.subr.bf16.mxu0 0
    %367 = vmatpush1.bf16.msra.mxu0 0
    %368 = vmatprep.subr.bf16.mxu0 0
    %369 = vmatpush1.bf16.msra.mxu0 0
    %370 = vmatprep.subr.bf16.mxu0 0
    %371 = vmatpush1.bf16.msra.mxu0 0
    %372 = vmatprep.subr.bf16.mxu0 0
    %373 = vmatpush1.bf16.msra.mxu0 0
    %374 = vmatprep.subr.bf16.mxu0 0
    %375 = vmatpush1.bf16.msra.mxu0 0
    %376 = vmatprep.subr.bf16.mxu0 0
    %377 = vmatpush1.bf16.msra.mxu0 0
    %378 = vmatprep.subr.bf16.mxu0 0
    %379 = vmatpush1.bf16.msra.mxu0 0
    %380 = vmatprep.subr.bf16.mxu0 0
    %381 = vmatpush1.bf16.msra.mxu0 0
    %382 = vmatprep.mubr.bf16.mxu0 0
    %383 = vmatmul.mubr.bf16.gmra.mrb[0].mxu0 %v193
    %v384 = vpop.f32.mrb[0].mxu0
    %v385 = vadd.f32 0.0, %v384
    %v386 = vpop.f32.mrb[0].mxu0
    %v387 = vadd.f32 0.0, %v386
    %v388 = vpop.f32.mrb[0].mxu0
    %v389 = vadd.f32 0.0, %v388
    %v390 = vpop.f32.mrb[0].mxu0
    %v391 = vadd.f32 0.0, %v390
    %392 = vmatprep.mubr.bf16.mxu0 0
    %393 = vmatmul.mubr.bf16.gmra.mrb[0].mxu0 %v196
    %v394 = vpop.f32.mrb[0].mxu0
    %v395 = vadd.f32 0.0, %v394
    %v396 = vpop.f32.mrb[0].mxu0
    %v397 = vadd.f32 0.0, %v396
    %v398 = vpop.f32.mrb[0].mxu0
    %v399 = vadd.f32 0.0, %v398
    %v400 = vpop.f32.mrb[0].mxu0
    %v401 = vadd.f32 0.0, %v400
    %402 = vmatprep.mubr.bf16.mxu0 0
    %403 = vmatmul.mubr.bf16.gmra.mrb[0].mxu0 %v199
    %v404 = vpop.f32.mrb[0].mxu0
    %v405 = vadd.f32 0.0, %v404
    %v406 = vpop.f32.mrb[0].mxu0
    %v407 = vadd.f32 0.0, %v406
    %v408 = vpop.f32.mrb[0].mxu0
    %v409 = vadd.f32 0.0, %v408
    %v410 = vpop.f32.mrb[0].mxu0
    %v411 = vadd.f32 0.0, %v410
    %412 = vmatprep.mubr.bf16.mxu0 0
    %413 = vmatmul.mubr.bf16.gmra.mrb[0].mxu0 %v202
    %v414 = vpop.f32.mrb[0].mxu0
    %v415 = vadd.f32 0.0, %v414
    %v416 = vpop.f32.mrb[0].mxu0
    %v417 = vadd.f32 0.0, %v416
    %v418 = vpop.f32.mrb[0].mxu0
    %v419 = vadd.f32 0.0, %v418
    %v420 = vpop.f32.mrb[0].mxu0
    %v421 = vadd.f32 0.0, %v420
    %422 = vdwg.mxu0
    %423 = vmatprep.subr.bf16.mxu0 %v166
    %424 = vmatpush1.bf16.msra.mxu0 %v165
    %425 = vmatprep.subr.bf16.mxu0 %v174
    %426 = vmatpush1.bf16.msra.mxu0 %v173
    %427 = vmatprep.subr.bf16.mxu0 0
    %428 = vmatpush1.bf16.msra.mxu0 0
    %429 = vmatprep.subr.bf16.mxu0 0
    %430 = vmatpush1.bf16.msra.mxu0 0
    %431 = vmatprep.subr.bf16.mxu0 0
    %432 = vmatpush1.bf16.msra.mxu0 0
    %433 = vmatprep.subr.bf16.mxu0 0
    %434 = vmatpush1.bf16.msra.mxu0 0
    %435 = vmatprep.subr.bf16.mxu0 0
    %436 = vmatpush1.bf16.msra.mxu0 0
    %437 = vmatprep.subr.bf16.mxu0 0
    %438 = vmatpush1.bf16.msra.mxu0 0
    %439 = vmatprep.subr.bf16.mxu0 0
    %440 = vmatpush1.bf16.msra.mxu0 0
    %441 = vmatprep.subr.bf16.mxu0 0
    %442 = vmatpush1.bf16.msra.mxu0 0
    %443 = vmatprep.subr.bf16.mxu0 0
    %444 = vmatpush1.bf16.msra.mxu0 0
    %445 = vmatprep.subr.bf16.mxu0 0
    %446 = vmatpush1.bf16.msra.mxu0 0
    %447 = vmatprep.subr.bf16.mxu0 0
    %448 = vmatpush1.bf16.msra.mxu0 0
    %449 = vmatprep.subr.bf16.mxu0 0
    %450 = vmatpush1.bf16.msra.mxu0 0
    %451 = vmatprep.subr.bf16.mxu0 0
    %452 = vmatpush1.bf16.msra.mxu0 0
    %453 = vmatprep.subr.bf16.mxu0 0
    %454 = vmatpush1.bf16.msra.mxu0 0
    %455 = vmatprep.mubr.bf16.mxu0 0
    %456 = vmatmul.mubr.bf16.gmra.mrb[0].mxu0 %v193
    %v457 = vpop.f32.mrb[0].mxu0
    %v458 = vadd.f32 0.0, %v457
    %v459 = vpop.f32.mrb[0].mxu0
    %v460 = vadd.f32 0.0, %v459
    %v461 = vpop.f32.mrb[0].mxu0
    %v462 = vadd.f32 0.0, %v461
    %v463 = vpop.f32.mrb[0].mxu0
    %v464 = vadd.f32 0.0, %v463
    %465 = vmatprep.mubr.bf16.mxu0 0
    %466 = vmatmul.mubr.bf16.gmra.mrb[0].mxu0 %v196
    %v467 = vpop.f32.mrb[0].mxu0
    %v468 = vadd.f32 0.0, %v467
    %v469 = vpop.f32.mrb[0].mxu0
    %v470 = vadd.f32 0.0, %v469
    %v471 = vpop.f32.mrb[0].mxu0
    %v472 = vadd.f32 0.0, %v471
    %v473 = vpop.f32.mrb[0].mxu0
    %v474 = vadd.f32 0.0, %v473
    %475 = vmatprep.mubr.bf16.mxu0 0
    %476 = vmatmul.mubr.bf16.gmra.mrb[0].mxu0 %v199
    %v477 = vpop.f32.mrb[0].mxu0
    %v478 = vadd.f32 0.0, %v477
    %v479 = vpop.f32.mrb[0].mxu0
    %v480 = vadd.f32 0.0, %v479
    %v481 = vpop.f32.mrb[0].mxu0
    %v482 = vadd.f32 0.0, %v481
    %v483 = vpop.f32.mrb[0].mxu0
    %v484 = vadd.f32 0.0, %v483
    %485 = vmatprep.mubr.bf16.mxu0 0
    %486 = vmatmul.mubr.bf16.gmra.mrb[0].mxu0 %v202
    %v487 = vpop.f32.mrb[0].mxu0
    %v488 = vadd.f32 0.0, %v487
    %v489 = vpop.f32.mrb[0].mxu0
    %v490 = vadd.f32 0.0, %v489
    %v491 = vpop.f32.mrb[0].mxu0
    %v492 = vadd.f32 0.0, %v491
    %v493 = vpop.f32.mrb[0].mxu0
    %v494 = vadd.f32 0.0, %v493
    %495 = vdwg.mxu0
    %v496 = vld [vmem:[%s2] sm:$0xff]
    %v497 = vld [vmem:[%s2 + $0x8] sm:$0xff]
    %v498 = vld [vmem:[%s2 + $0x10] sm:$0xff]
    %v499 = vld [vmem:[%s2 + $0x18] sm:$0xff]
    %v500 = vld [vmem:[%s2 + $0x20] sm:$0xff]
    %v501 = vld [vmem:[%s2 + $0x28] sm:$0xff]
    %v502 = vld [vmem:[%s2 + $0x30] sm:$0xff]
    %v503 = vld [vmem:[%s2 + $0x38] sm:$0xff]
    %505 = vset.pattern.permute.xlu0 0
    %506 = vperm.xlu0 %505, %v496
    %v507 = vpop.permute.xlu0 %506
    %510 = vset.pattern.permute.xlu0 0
    %511 = vperm.xlu0 %510, %v497
    %v512 = vpop.permute.xlu0 %511
    %515 = vset.pattern.permute.xlu0 0
    %516 = vperm.xlu0 %515, %v498
    %v517 = vpop.permute.xlu0 %516
    %520 = vset.pattern.permute.xlu0 0
    %521 = vperm.xlu0 %520, %v499
    %v522 = vpop.permute.xlu0 %521
    %525 = vset.pattern.permute.xlu0 0
    %526 = vperm.xlu0 %525, %v500
    %v527 = vpop.permute.xlu0 %526
    %530 = vset.pattern.permute.xlu0 0
    %531 = vperm.xlu0 %530, %v501
    %v532 = vpop.permute.xlu0 %531
    %535 = vset.pattern.permute.xlu0 0
    %536 = vperm.xlu0 %535, %v502
    %v537 = vpop.permute.xlu0 %536
    %540 = vset.pattern.permute.xlu0 0
    %541 = vperm.xlu0 %540, %v503
    %v542 = vpop.permute.xlu0 %541
    %v544 = vmul.f32 %v239, %v507
    %v545 = vmul.f32 %v241, %v507
    %v546 = vmul.f32 %v312, %v507
    %v547 = vmul.f32 %v314, %v507
    %v548 = vmul.f32 %v385, %v507
    %v549 = vmul.f32 %v387, %v507
    %v550 = vmul.f32 %v458, %v507
    %v551 = vmul.f32 %v460, %v507
    %v552 = vmul.f32 %v243, %v512
    %v553 = vmul.f32 %v245, %v512
    %v554 = vmul.f32 %v316, %v512
    %v555 = vmul.f32 %v318, %v512
    %v556 = vmul.f32 %v389, %v512
    %v557 = vmul.f32 %v391, %v512
    %v558 = vmul.f32 %v462, %v512
    %v559 = vmul.f32 %v464, %v512
    %v560 = vmul.f32 %v249, %v517
    %v561 = vmul.f32 %v251, %v517
    %v562 = vmul.f32 %v322, %v517
    %v563 = vmul.f32 %v324, %v517
    %v564 = vmul.f32 %v395, %v517
    %v565 = vmul.f32 %v397, %v517
    %v566 = vmul.f32 %v468, %v517
    %v567 = vmul.f32 %v470, %v517
    %v568 = vmul.f32 %v253, %v522
    %v569 = vmul.f32 %v255, %v522
    %v570 = vmul.f32 %v326, %v522
    %v571 = vmul.f32 %v328, %v522
    %v572 = vmul.f32 %v399, %v522
    %v573 = vmul.f32 %v401, %v522
    %v574 = vmul.f32 %v472, %v522
    %v575 = vmul.f32 %v474, %v522
    %v576 = vmul.f32 %v259, %v527
    %v577 = vmul.f32 %v261, %v527
    %v578 = vmul.f32 %v332, %v527
    %v579 = vmul.f32 %v334, %v527
    %v580 = vmul.f32 %v405, %v527
    %v581 = vmul.f32 %v407, %v527
    %v582 = vmul.f32 %v478, %v527
    %v583 = vmul.f32 %v480, %v527
    %v584 = vmul.f32 %v263, %v532
    %v585 = vmul.f32 %v265, %v532
    %v586 = vmul.f32 %v336, %v532
    %v587 = vmul.f32 %v338, %v532
    %v588 = vmul.f32 %v409, %v532
    %v589 = vmul.f32 %v411, %v532
    %v590 = vmul.f32 %v482, %v532
    %v591 = vmul.f32 %v484, %v532
    %v592 = vmul.f32 %v269, %v537
    %v593 = vmul.f32 %v271, %v537
    %v594 = vmul.f32 %v342, %v537
    %v595 = vmul.f32 %v344, %v537
    %v596 = vmul.f32 %v415, %v537
    %v597 = vmul.f32 %v417, %v537
    %v598 = vmul.f32 %v488, %v537
    %v599 = vmul.f32 %v490, %v537
    %v600 = vmul.f32 %v273, %v542
    %v601 = vmul.f32 %v275, %v542
    %v602 = vmul.f32 %v346, %v542
    %v603 = vmul.f32 %v348, %v542
    %v604 = vmul.f32 %v419, %v542
    %v605 = vmul.f32 %v421, %v542
    %v606 = vmul.f32 %v492, %v542
    %v607 = vmul.f32 %v494, %v542
    %v608 = vld [vmem:[%s3] sm:$0xff]
    %v609 = vld [vmem:[%s3 + $0x8] sm:$0xff]
    %v610 = vld [vmem:[%s3 + $0x10] sm:$0xff]
    %v611 = vld [vmem:[%s3 + $0x18] sm:$0xff]
    %v612 = vld [vmem:[%s3 + $0x20] sm:$0xff]
    %v613 = vld [vmem:[%s3 + $0x28] sm:$0xff]
    %v614 = vld [vmem:[%s3 + $0x30] sm:$0xff]
    %v615 = vld [vmem:[%s3 + $0x38] sm:$0xff]
    %617 = vset.pattern.permute.xlu0 0
    %618 = vperm.xlu0 %617, %v608
    %v619 = vpop.permute.xlu0 %618
    %622 = vset.pattern.permute.xlu0 0
    %623 = vperm.xlu0 %622, %v609
    %v624 = vpop.permute.xlu0 %623
    %627 = vset.pattern.permute.xlu0 0
    %628 = vperm.xlu0 %627, %v610
    %v629 = vpop.permute.xlu0 %628
    %632 = vset.pattern.permute.xlu0 0
    %633 = vperm.xlu0 %632, %v611
    %v634 = vpop.permute.xlu0 %633
    %637 = vset.pattern.permute.xlu0 0
    %638 = vperm.xlu0 %637, %v612
    %v639 = vpop.permute.xlu0 %638
    %642 = vset.pattern.permute.xlu0 0
    %643 = vperm.xlu0 %642, %v613
    %v644 = vpop.permute.xlu0 %643
    %647 = vset.pattern.permute.xlu0 0
    %648 = vperm.xlu0 %647, %v614
    %v649 = vpop.permute.xlu0 %648
    %652 = vset.pattern.permute.xlu0 0
    %653 = vperm.xlu0 %652, %v615
    %v654 = vpop.permute.xlu0 %653
    %v656 = vadd.f32 %v544, %v619
    %v657 = vadd.f32 %v545, %v619
    %v658 = vadd.f32 %v546, %v619
    %v659 = vadd.f32 %v547, %v619
    %v660 = vadd.f32 %v548, %v619
    %v661 = vadd.f32 %v549, %v619
    %v662 = vadd.f32 %v550, %v619
    %v663 = vadd.f32 %v551, %v619
    %v664 = vadd.f32 %v552, %v624
    %v665 = vadd.f32 %v553, %v624
    %v666 = vadd.f32 %v554, %v624
    %v667 = vadd.f32 %v555, %v624
    %v668 = vadd.f32 %v556, %v624
    %v669 = vadd.f32 %v557, %v624
    %v670 = vadd.f32 %v558, %v624
    %v671 = vadd.f32 %v559, %v624
    %v672 = vadd.f32 %v560, %v629
    %v673 = vadd.f32 %v561, %v629
    %v674 = vadd.f32 %v562, %v629
    %v675 = vadd.f32 %v563, %v629
    %v676 = vadd.f32 %v564, %v629
    %v677 = vadd.f32 %v565, %v629
    %v678 = vadd.f32 %v566, %v629
    %v679 = vadd.f32 %v567, %v629
    %v680 = vadd.f32 %v568, %v634
    %v681 = vadd.f32 %v569, %v634
    %v682 = vadd.f32 %v570, %v634
    %v683 = vadd.f32 %v571, %v634
    %v684 = vadd.f32 %v572, %v634
    %v685 = vadd.f32 %v573, %v634
    %v686 = vadd.f32 %v574, %v634
    %v687 = vadd.f32 %v575, %v634
    %v688 = vadd.f32 %v576, %v639
    %v689 = vadd.f32 %v577, %v639
    %v690 = vadd.f32 %v578, %v639
    %v691 = vadd.f32 %v579, %v639
    %v692 = vadd.f32 %v580, %v639
    %v693 = vadd.f32 %v581, %v639
    %v694 = vadd.f32 %v582, %v639
    %v695 = vadd.f32 %v583, %v639
    %v696 = vadd.f32 %v584, %v644
    %v697 = vadd.f32 %v585, %v644
    %v698 = vadd.f32 %v586, %v644
    %v699 = vadd.f32 %v587, %v644
    %v700 = vadd.f32 %v588, %v644
    %v701 = vadd.f32 %v589, %v644
    %v702 = vadd.f32 %v590, %v644
    %v703 = vadd.f32 %v591, %v644
    %v704 = vadd.f32 %v592, %v649
    %v705 = vadd.f32 %v593, %v649
    %v706 = vadd.f32 %v594, %v649
    %v707 = vadd.f32 %v595, %v649
    %v708 = vadd.f32 %v596, %v649
    %v709 = vadd.f32 %v597, %v649
    %v710 = vadd.f32 %v598, %v649
    %v711 = vadd.f32 %v599, %v649
    %v712 = vadd.f32 %v600, %v654
    %v713 = vadd.f32 %v601, %v654
    %v714 = vadd.f32 %v602, %v654
    %v715 = vadd.f32 %v603, %v654
    %v716 = vadd.f32 %v604, %v654
    %v717 = vadd.f32 %v605, %v654
    %v718 = vadd.f32 %v606, %v654
    %v719 = vadd.f32 %v607, %v654
    %vm720 = vcmp.ge.f32.partialorder %v656, 0.0
    %vm721 = vcmp.ge.f32.partialorder %v657, 0.0
    %vm722 = vcmp.ge.f32.partialorder %v658, 0.0
    %vm723 = vcmp.ge.f32.partialorder %v659, 0.0
    %vm724 = vcmp.ge.f32.partialorder %v660, 0.0
    %vm725 = vcmp.ge.f32.partialorder %v661, 0.0
    %vm726 = vcmp.ge.f32.partialorder %v662, 0.0
    %vm727 = vcmp.ge.f32.partialorder %v663, 0.0
    %vm728 = vcmp.ge.f32.partialorder %v664, 0.0
    %vm729 = vcmp.ge.f32.partialorder %v665, 0.0
    %vm730 = vcmp.ge.f32.partialorder %v666, 0.0
    %vm731 = vcmp.ge.f32.partialorder %v667, 0.0
    %vm732 = vcmp.ge.f32.partialorder %v668, 0.0
    %vm733 = vcmp.ge.f32.partialorder %v669, 0.0
    %vm734 = vcmp.ge.f32.partialorder %v670, 0.0
    %vm735 = vcmp.ge.f32.partialorder %v671, 0.0
    %vm736 = vcmp.ge.f32.partialorder %v672, 0.0
    %vm737 = vcmp.ge.f32.partialorder %v673, 0.0
    %vm738 = vcmp.ge.f32.partialorder %v674, 0.0
    %vm739 = vcmp.ge.f32.partialorder %v675, 0.0
    %vm740 = vcmp.ge.f32.partialorder %v676, 0.0
    %vm741 = vcmp.ge.f32.partialorder %v677, 0.0
    %vm742 = vcmp.ge.f32.partialorder %v678, 0.0
    %vm743 = vcmp.ge.f32.partialorder %v679, 0.0
    %vm744 = vcmp.ge.f32.partialorder %v680, 0.0
    %vm745 = vcmp.ge.f32.partialorder %v681, 0.0
    %vm746 = vcmp.ge.f32.partialorder %v682, 0.0
    %vm747 = vcmp.ge.f32.partialorder %v683, 0.0
    %vm748 = vcmp.ge.f32.partialorder %v684, 0.0
    %vm749 = vcmp.ge.f32.partialorder %v685, 0.0
    %vm750 = vcmp.ge.f32.partialorder %v686, 0.0
    %vm751 = vcmp.ge.f32.partialorder %v687, 0.0
    %vm752 = vcmp.ge.f32.partialorder %v688, 0.0
    %vm753 = vcmp.ge.f32.partialorder %v689, 0.0
    %vm754 = vcmp.ge.f32.partialorder %v690, 0.0
    %vm755 = vcmp.ge.f32.partialorder %v691, 0.0
    %vm756 = vcmp.ge.f32.partialorder %v692, 0.0
    %vm757 = vcmp.ge.f32.partialorder %v693, 0.0
    %vm758 = vcmp.ge.f32.partialorder %v694, 0.0
    %vm759 = vcmp.ge.f32.partialorder %v695, 0.0
    %vm760 = vcmp.ge.f32.partialorder %v696, 0.0
    %vm761 = vcmp.ge.f32.partialorder %v697, 0.0
    %vm762 = vcmp.ge.f32.partialorder %v698, 0.0
    %vm763 = vcmp.ge.f32.partialorder %v699, 0.0
    %vm764 = vcmp.ge.f32.partialorder %v700, 0.0
    %vm765 = vcmp.ge.f32.partialorder %v701, 0.0
    %vm766 = vcmp.ge.f32.partialorder %v702, 0.0
    %vm767 = vcmp.ge.f32.partialorder %v703, 0.0
    %vm768 = vcmp.ge.f32.partialorder %v704, 0.0
    %vm769 = vcmp.ge.f32.partialorder %v705, 0.0
    %vm770 = vcmp.ge.f32.partialorder %v706, 0.0
    %vm771 = vcmp.ge.f32.partialorder %v707, 0.0
    %vm772 = vcmp.ge.f32.partialorder %v708, 0.0
    %vm773 = vcmp.ge.f32.partialorder %v709, 0.0
    %vm774 = vcmp.ge.f32.partialorder %v710, 0.0
    %vm775 = vcmp.ge.f32.partialorder %v711, 0.0
    %vm776 = vcmp.ge.f32.partialorder %v712, 0.0
    %vm777 = vcmp.ge.f32.partialorder %v713, 0.0
    %vm778 = vcmp.ge.f32.partialorder %v714, 0.0
    %vm779 = vcmp.ge.f32.partialorder %v715, 0.0
    %vm780 = vcmp.ge.f32.partialorder %v716, 0.0
    %vm781 = vcmp.ge.f32.partialorder %v717, 0.0
    %vm782 = vcmp.ge.f32.partialorder %v718, 0.0
    %vm783 = vcmp.ge.f32.partialorder %v719, 0.0
    %v784 = vmul.f32 %v656, 0.2
    %v785 = vmul.f32 %v657, 0.2
    %v786 = vmul.f32 %v658, 0.2
    %v787 = vmul.f32 %v659, 0.2
    %v788 = vmul.f32 %v660, 0.2
    %v789 = vmul.f32 %v661, 0.2
    %v790 = vmul.f32 %v662, 0.2
    %v791 = vmul.f32 %v663, 0.2
    %v792 = vmul.f32 %v664, 0.2
    %v793 = vmul.f32 %v665, 0.2
    %v794 = vmul.f32 %v666, 0.2
    %v795 = vmul.f32 %v667, 0.2
    %v796 = vmul.f32 %v668, 0.2
    %v797 = vmul.f32 %v669, 0.2
    %v798 = vmul.f32 %v670, 0.2
    %v799 = vmul.f32 %v671, 0.2
    %v800 = vmul.f32 %v672, 0.2
    %v801 = vmul.f32 %v673, 0.2
    %v802 = vmul.f32 %v674, 0.2
    %v803 = vmul.f32 %v675, 0.2
    %v804 = vmul.f32 %v676, 0.2
    %v805 = vmul.f32 %v677, 0.2
    %v806 = vmul.f32 %v678, 0.2
    %v807 = vmul.f32 %v679, 0.2
    %v808 = vmul.f32 %v680, 0.2
    %v809 = vmul.f32 %v681, 0.2
    %v810 = vmul.f32 %v682, 0.2
    %v811 = vmul.f32 %v683, 0.2
    %v812 = vmul.f32 %v684, 0.2
    %v813 = vmul.f32 %v685, 0.2
    %v814 = vmul.f32 %v686, 0.2
    %v815 = vmul.f32 %v687, 0.2
    %v816 = vmul.f32 %v688, 0.2
    %v817 = vmul.f32 %v689, 0.2
    %v818 = vmul.f32 %v690, 0.2
    %v819 = vmul.f32 %v691, 0.2
    %v820 = vmul.f32 %v692, 0.2
    %v821 = vmul.f32 %v693, 0.2
    %v822 = vmul.f32 %v694, 0.2
    %v823 = vmul.f32 %v695, 0.2
    %v824 = vmul.f32 %v696, 0.2
    %v825 = vmul.f32 %v697, 0.2
    %v826 = vmul.f32 %v698, 0.2
    %v827 = vmul.f32 %v699, 0.2
    %v828 = vmul.f32 %v700, 0.2
    %v829 = vmul.f32 %v701, 0.2
    %v830 = vmul.f32 %v702, 0.2
    %v831 = vmul.f32 %v703, 0.2
    %v832 = vmul.f32 %v704, 0.2
    %v833 = vmul.f32 %v705, 0.2
    %v834 = vmul.f32 %v706, 0.2
    %v835 = vmul.f32 %v707, 0.2
    %v836 = vmul.f32 %v708, 0.2
    %v837 = vmul.f32 %v709, 0.2
    %v838 = vmul.f32 %v710, 0.2
    %v839 = vmul.f32 %v711, 0.2
    %v840 = vmul.f32 %v712, 0.2
    %v841 = vmul.f32 %v713, 0.2
    %v842 = vmul.f32 %v714, 0.2
    %v843 = vmul.f32 %v715, 0.2
    %v844 = vmul.f32 %v716, 0.2
    %v845 = vmul.f32 %v717, 0.2
    %v846 = vmul.f32 %v718, 0.2
    %v847 = vmul.f32 %v719, 0.2
    %v848 = vsel %vm720, %v656, %v784
    %v849 = vsel %vm721, %v657, %v785
    %v850 = vsel %vm722, %v658, %v786
    %v851 = vsel %vm723, %v659, %v787
    %v852 = vsel %vm724, %v660, %v788
    %v853 = vsel %vm725, %v661, %v789
    %v854 = vsel %vm726, %v662, %v790
    %v855 = vsel %vm727, %v663, %v791
    %v856 = vsel %vm728, %v664, %v792
    %v857 = vsel %vm729, %v665, %v793
    %v858 = vsel %vm730, %v666, %v794
    %v859 = vsel %vm731, %v667, %v795
    %v860 = vsel %vm732, %v668, %v796
    %v861 = vsel %vm733, %v669, %v797
    %v862 = vsel %vm734, %v670, %v798
    %v863 = vsel %vm735, %v671, %v799
    %v864 = vsel %vm736, %v672, %v800
    %v865 = vsel %vm737, %v673, %v801
    %v866 = vsel %vm738, %v674, %v802
    %v867 = vsel %vm739, %v675, %v803
    %v868 = vsel %vm740, %v676, %v804
    %v869 = vsel %vm741, %v677, %v805
    %v870 = vsel %vm742, %v678, %v806
    %v871 = vsel %vm743, %v679, %v807
    %v872 = vsel %vm744, %v680, %v808
    %v873 = vsel %vm745, %v681, %v809
    %v874 = vsel %vm746, %v682, %v810
    %v875 = vsel %vm747, %v683, %v811
    %v876 = vsel %vm748, %v684, %v812
    %v877 = vsel %vm749, %v685, %v813
    %v878 = vsel %vm750, %v686, %v814
    %v879 = vsel %vm751, %v687, %v815
    %v880 = vsel %vm752, %v688, %v816
    %v881 = vsel %vm753, %v689, %v817
    %v882 = vsel %vm754, %v690, %v818
    %v883 = vsel %vm755, %v691, %v819
    %v884 = vsel %vm756, %v692, %v820
    %v885 = vsel %vm757, %v693, %v821
    %v886 = vsel %vm758, %v694, %v822
    %v887 = vsel %vm759, %v695, %v823
    %v888 = vsel %vm760, %v696, %v824
    %v889 = vsel %vm761, %v697, %v825
    %v890 = vsel %vm762, %v698, %v826
    %v891 = vsel %vm763, %v699, %v827
    %v892 = vsel %vm764, %v700, %v828
    %v893 = vsel %vm765, %v701, %v829
    %v894 = vsel %vm766, %v702, %v830
    %v895 = vsel %vm767, %v703, %v831
    %v896 = vsel %vm768, %v704, %v832
    %v897 = vsel %vm769, %v705, %v833
    %v898 = vsel %vm770, %v706, %v834
    %v899 = vsel %vm771, %v707, %v835
    %v900 = vsel %vm772, %v708, %v836
    %v901 = vsel %vm773, %v709, %v837
    %v902 = vsel %vm774, %v710, %v838
    %v903 = vsel %vm775, %v711, %v839
    %v904 = vsel %vm776, %v712, %v840
    %v905 = vsel %vm777, %v713, %v841
    %v906 = vsel %vm778, %v714, %v842
    %v907 = vsel %vm779, %v715, %v843
    %v908 = vsel %vm780, %v716, %v844
    %v909 = vsel %vm781, %v717, %v845
    %v910 = vsel %vm782, %v718, %v846
    %v911 = vsel %vm783, %v719, %v847
    %v912 = vpack.c.bf16 %v856, %v848
    %v913 = vpack.c.bf16 %v857, %v849
    %v914 = vpack.c.bf16 %v858, %v850
    %v915 = vpack.c.bf16 %v859, %v851
    %v916 = vpack.c.bf16 %v860, %v852
    %v917 = vpack.c.bf16 %v861, %v853
    %v918 = vpack.c.bf16 %v862, %v854
    %v919 = vpack.c.bf16 %v863, %v855
    %v920 = vpack.c.bf16 %v872, %v864
    %v921 = vpack.c.bf16 %v873, %v865
    %v922 = vpack.c.bf16 %v874, %v866
    %v923 = vpack.c.bf16 %v875, %v867
    %v924 = vpack.c.bf16 %v876, %v868
    %v925 = vpack.c.bf16 %v877, %v869
    %v926 = vpack.c.bf16 %v878, %v870
    %v927 = vpack.c.bf16 %v879, %v871
    %v928 = vpack.c.bf16 %v888, %v880
    %v929 = vpack.c.bf16 %v889, %v881
    %v930 = vpack.c.bf16 %v890, %v882
    %v931 = vpack.c.bf16 %v891, %v883
    %v932 = vpack.c.bf16 %v892, %v884
    %v933 = vpack.c.bf16 %v893, %v885
    %v934 = vpack.c.bf16 %v894, %v886
    %v935 = vpack.c.bf16 %v895, %v887
    %v936 = vpack.c.bf16 %v904, %v896
    %v937 = vpack.c.bf16 %v905, %v897
    %v938 = vpack.c.bf16 %v906, %v898
    %v939 = vpack.c.bf16 %v907, %v899
    %v940 = vpack.c.bf16 %v908, %v900
    %v941 = vpack.c.bf16 %v909, %v901
    %v942 = vpack.c.bf16 %v910, %v902
    %v943 = vpack.c.bf16 %v911, %v903
    %v976 = vunpack.c.l.b16 %v912
    %v977 = vunpack.c.l.b16 %v913
    %v978 = vunpack.c.l.b16 %v914
    %v979 = vunpack.c.l.b16 %v915
    %v980 = vunpack.c.l.b16 %v916
    %v981 = vunpack.c.l.b16 %v917
    %v982 = vunpack.c.l.b16 %v918
    %v983 = vunpack.c.l.b16 %v919
    %v984 = vunpack.c.h.b16 %v912
    %v985 = vunpack.c.h.b16 %v913
    %v986 = vunpack.c.h.b16 %v914
    %v987 = vunpack.c.h.b16 %v915
    %v988 = vunpack.c.h.b16 %v916
    %v989 = vunpack.c.h.b16 %v917
    %v990 = vunpack.c.h.b16 %v918
    %v991 = vunpack.c.h.b16 %v919
    %v992 = vunpack.c.l.b16 %v920
    %v993 = vunpack.c.l.b16 %v921
    %v994 = vunpack.c.l.b16 %v922
    %v995 = vunpack.c.l.b16 %v923
    %v996 = vunpack.c.l.b16 %v924
    %v997 = vunpack.c.l.b16 %v925
    %v998 = vunpack.c.l.b16 %v926
    %v999 = vunpack.c.l.b16 %v927
    %v1000 = vunpack.c.h.b16 %v920
    %v1001 = vunpack.c.h.b16 %v921
    %v1002 = vunpack.c.h.b16 %v922
    %v1003 = vunpack.c.h.b16 %v923
    %v1004 = vunpack.c.h.b16 %v924
    %v1005 = vunpack.c.h.b16 %v925
    %v1006 = vunpack.c.h.b16 %v926
    %v1007 = vunpack.c.h.b16 %v927
    %v1008 = vunpack.c.l.b16 %v928
    %v1009 = vunpack.c.l.b16 %v929
    %v1010 = vunpack.c.l.b16 %v930
    %v1011 = vunpack.c.l.b16 %v931
    %v1012 = vunpack.c.l.b16 %v932
    %v1013 = vunpack.c.l.b16 %v933
    %v1014 = vunpack.c.l.b16 %v934
    %v1015 = vunpack.c.l.b16 %v935
    %v1016 = vunpack.c.h.b16 %v928
    %v1017 = vunpack.c.h.b16 %v929
    %v1018 = vunpack.c.h.b16 %v930
    %v1019 = vunpack.c.h.b16 %v931
    %v1020 = vunpack.c.h.b16 %v932
    %v1021 = vunpack.c.h.b16 %v933
    %v1022 = vunpack.c.h.b16 %v934
    %v1023 = vunpack.c.h.b16 %v935
    %v1024 = vunpack.c.l.b16 %v936
    %v1025 = vunpack.c.l.b16 %v937
    %v1026 = vunpack.c.l.b16 %v938
    %v1027 = vunpack.c.l.b16 %v939
    %v1028 = vunpack.c.l.b16 %v940
    %v1029 = vunpack.c.l.b16 %v941
    %v1030 = vunpack.c.l.b16 %v942
    %v1031 = vunpack.c.l.b16 %v943
    %v1032 = vunpack.c.h.b16 %v936
    %v1033 = vunpack.c.h.b16 %v937
    %v1034 = vunpack.c.h.b16 %v938
    %v1035 = vunpack.c.h.b16 %v939
    %v1036 = vunpack.c.h.b16 %v940
    %v1037 = vunpack.c.h.b16 %v941
    %v1038 = vunpack.c.h.b16 %v942
    %v1039 = vunpack.c.h.b16 %v943
    %v1040 = vpack.c.b16 %v977, %v976
    %v1041 = vpack.c.b16 %v979, %v978
    %v1042 = vpack.c.b16 %v981, %v980
    %v1043 = vpack.c.b16 %v983, %v982
    %v1044 = vpack.c.b16 %v985, %v984
    %v1045 = vpack.c.b16 %v987, %v986
    %v1046 = vpack.c.b16 %v989, %v988
    %v1047 = vpack.c.b16 %v991, %v990
    %v1048 = vpack.c.b16 %v993, %v992
    %v1049 = vpack.c.b16 %v995, %v994
    %v1050 = vpack.c.b16 %v997, %v996
    %v1051 = vpack.c.b16 %v999, %v998
    %v1052 = vpack.c.b16 %v1001, %v1000
    %v1053 = vpack.c.b16 %v1003, %v1002
    %v1054 = vpack.c.b16 %v1005, %v1004
    %v1055 = vpack.c.b16 %v1007, %v1006
    %v1056 = vpack.c.b16 %v1009, %v1008
    %v1057 = vpack.c.b16 %v1011, %v1010
    %v1058 = vpack.c.b16 %v1013, %v1012
    %v1059 = vpack.c.b16 %v1015, %v1014
    %v1060 = vpack.c.b16 %v1017, %v1016
    %v1061 = vpack.c.b16 %v1019, %v1018
    %v1062 = vpack.c.b16 %v1021, %v1020
    %v1063 = vpack.c.b16 %v1023, %v1022
    %v1064 = vpack.c.b16 %v1025, %v1024
    %v1065 = vpack.c.b16 %v1027, %v1026
    %v1066 = vpack.c.b16 %v1029, %v1028
    %v1067 = vpack.c.b16 %v1031, %v1030
    %v1068 = vpack.c.b16 %v1033, %v1032
    %v1069 = vpack.c.b16 %v1035, %v1034
    %v1070 = vpack.c.b16 %v1037, %v1036
    %v1071 = vpack.c.b16 %v1039, %v1038
    %1104 = vst [vmem:[%s4] sm:$0xff] %v1040
    %1105 = vst [vmem:[%s4 + $0x8] sm:$0xff] %v1041
    %1106 = vst [vmem:[%s4 + $0x10] sm:$0xff] %v1042
    %1107 = vst [vmem:[%s4 + $0x18] sm:$0xff] %v1043
    %1108 = vst [vmem:[%s4 + $0x20] sm:$0xff] %v1044
    %1109 = vst [vmem:[%s4 + $0x28] sm:$0xff] %v1045
    %1110 = vst [vmem:[%s4 + $0x30] sm:$0xff] %v1046
    %1111 = vst [vmem:[%s4 + $0x38] sm:$0xff] %v1047
    %1112 = vst [vmem:[%s4 + $0x40] sm:$0xff] %v1048
    %1113 = vst [vmem:[%s4 + $0x48] sm:$0xff] %v1049
    %1114 = vst [vmem:[%s4 + $0x50] sm:$0xff] %v1050
    %1115 = vst [vmem:[%s4 + $0x58] sm:$0xff] %v1051
    %1116 = vst [vmem:[%s4 + $0x60] sm:$0xff] %v1052
    %1117 = vst [vmem:[%s4 + $0x68] sm:$0xff] %v1053
    %1118 = vst [vmem:[%s4 + $0x70] sm:$0xff] %v1054
    %1119 = vst [vmem:[%s4 + $0x78] sm:$0xff] %v1055
    %1120 = vst [vmem:[%s4 + $0x80] sm:$0xff] %v1056
    %1121 = vst [vmem:[%s4 + $0x88] sm:$0xff] %v1057
    %1122 = vst [vmem:[%s4 + $0x90] sm:$0xff] %v1058
    %1123 = vst [vmem:[%s4 + $0x98] sm:$0xff] %v1059
    %1124 = vst [vmem:[%s4 + $0xa0] sm:$0xff] %v1060
    %1125 = vst [vmem:[%s4 + $0xa8] sm:$0xff] %v1061
    %1126 = vst [vmem:[%s4 + $0xb0] sm:$0xff] %v1062
    %1127 = vst [vmem:[%s4 + $0xb8] sm:$0xff] %v1063
    %1128 = vst [vmem:[%s4 + $0xc0] sm:$0xff] %v1064
    %1129 = vst [vmem:[%s4 + $0xc8] sm:$0xff] %v1065
    %1130 = vst [vmem:[%s4 + $0xd0] sm:$0xff] %v1066
    %1131 = vst [vmem:[%s4 + $0xd8] sm:$0xff] %v1067
    %1132 = vst [vmem:[%s4 + $0xe0] sm:$0xff] %v1068
    %1133 = vst [vmem:[%s4 + $0xe8] sm:$0xff] %v1069
    %1134 = vst [vmem:[%s4 + $0xf0] sm:$0xff] %v1070
    %1135 = vst [vmem:[%s4 + $0xf8] sm:$0xff] %v1071
    // Predicated region
    $region41: #{deconv3d_forward.3} parent=1 // pred_check
      _
    $region42: #{deconv3d_forward.3} parent=1 // pred_check_branch
      %1137 = sbr.rel (0) target = $region44
    $region43: #{deconv3d_forward.3} parent=1 // pred_region
      _
    $region44: #{deconv3d_forward.3} parent=1 // pred_fallthru
      _
    // Predicated region
    $region45: #{deconv3d_forward.3} parent=1 // pred_check
      _
    $region46: #{deconv3d_forward.3} parent=1 // pred_check_branch
      %1139 = sbr.rel (0) target = $region48
    $region47: #{deconv3d_forward.3} parent=1 // pred_region
      _
    $region48: #{deconv3d_forward.3} parent=1 // pred_fallthru
      _

</llo_original>
